<compile_context>
chip_gen: v7x
topology: tpu7x:2x2x1
jax: 0.10.0
libtpu: 0.0.40
codegen_flags: <defaults>
</compile_context>

<pallas_src>
import functools

import numpy as np
import jax
import jax.numpy as jnp
from jax import lax
from jax.experimental import pallas as pl
from jax.experimental.pallas import tpu as pltpu

EPS = 1e-5            # PyTorch BatchNorm default eps
F32 = jnp.float32
BF16 = jnp.bfloat16


def _roll(x, shift, axis):
    """jnp.roll with the shift normalized to a positive static amount."""
    n = x.shape[axis]
    s = shift % n
    if s == 0:
        return x
    return pltpu.roll(x, shift=s, axis=axis)


# ---------------------------------------------------------------------------
# Static configuration derived from the hyperparameters / input size
# ---------------------------------------------------------------------------
def make_config(cnn_channels, spp_sizes, linear_sizes, H, W):
    n_conv = len(cnn_channels) - 1
    conv = []
    h, w = H, W
    for l in range(n_conv):
        assert h % 2 == 0 and w % 2 == 0, "spatial dims must halve cleanly"
        cin, cout = cnn_channels[l], cnn_channels[l + 1]
        wb = W if l == 0 else conv[l - 1]['w']   # stripe width of input buffer
        step = 1 if l == 0 else 2                # lane stride of valid columns
        conv.append(dict(l=l, h=h, w=w, cin=cin, cout=cout, wb=wb, step=step,
                         lb=cin * wb, lout=cout * w))
        h //= 2
        w //= 2
    hf, wf = h, w                                 # final feature-map size
    c_last = cnn_channels[-1]
    lr = conv[-1]['lout']                         # lane width of last conv GEMM
    wr = conv[-1]['w']                            # its stripe width (= 2*wf)
    for oh, ow in spp_sizes:
        # TODO(synk): non-uniform adaptive-pool bins (hf % oh != 0) unsupported
        assert hf % oh == 0 and wf % ow == 0
    n_rows = sum(oh for oh, _ in spp_sizes)
    feat_w = n_rows * lr                          # kernel SPP feature width
    torch_feat = int(c_last * sum(oh * ow for oh, ow in spp_sizes))
    return dict(conv=conv, spp_sizes=list(spp_sizes), hf=hf, wf=wf,
                c_last=c_last, lr=lr, wr=wr, n_feat_rows=n_rows,
                feat_w=feat_w, torch_feat=torch_feat,
                linear_sizes=tuple(linear_sizes),
                n_hidden_linear=len(linear_sizes) - 1,
                num_classes=int(linear_sizes[-1]))


def spp_lane_index(cfg):
    """Kernel feature lane for every PyTorch-ordered SPP feature index."""
    hf, wf, wr, lr = cfg['hf'], cfg['wf'], cfg['wr'], cfg['lr']
    c_last = cfg['c_last']
    lanes = []
    row_off = 0
    for (oh, ow) in cfg['spp_sizes']:
        kw = wf // ow
        for c in range(c_last):
            for i in range(oh):
                for j in range(ow):
                    lanes.append((row_off + i) * lr + c * wr + 2 * j * kw)
        row_off += oh
    return np.asarray(lanes, np.int64)


# ---------------------------------------------------------------------------
# Fused forward kernel: conv blocks -> SPP -> linear stack (Bt samples / step)
# ---------------------------------------------------------------------------
def make_fused_kernel(cfg, Bt):
    conv_cfg = cfg['conv']
    spp_sizes = cfg['spp_sizes']
    n_hidden = cfg['n_hidden_linear']
    hf, wf, lr = cfg['hf'], cfg['wf'], cfg['lr']
    n_conv = len(conv_cfg)
    n_in = 1 + 5 * n_conv + 3 * n_hidden + 2

    def kernel(*refs):
        in_refs = refs[:n_in]
        out_ref = refs[n_in]
        scratch = list(refs[n_in + 1:])

        dot = functools.partial(jnp.dot, preferred_element_type=jnp.float32)

        # --- unpack inputs ---
        pos = 0
        x_ref = in_refs[pos]; pos += 1
        conv_w = []
        for _ in range(n_conv):
            conv_w.append(in_refs[pos:pos + 5]); pos += 5   # 3 taps, scale, shift
        lin_w = []
        for _ in range(n_hidden):
            lin_w.append(in_refs[pos:pos + 3]); pos += 3    # W, scale, shift
        wlast_ref, blast_ref = in_refs[pos:pos + 2]

        sy_refs = scratch[:n_conv]       # post-BN/ReLU buffers (for row pool)
        srm_ref = scratch[n_conv]        # final pooled map (for SPP row groups)

        # ---------------- conv -> BN -> ReLU -> maxpool stack ----------------
        act = x_ref[...]                                   # (Bt*H, lb0) f32
        rmax = None
        for l, c in enumerate(conv_cfg):
            h, lout = c['h'], c['lout']
            hh = h // 2
            rows = Bt * h
            b0_ref, b1_ref, b2_ref, s_ref, t_ref = conv_w[l]

            # Vertical 'same'-conv taps = sublane rolls of the stacked batch;
            # per-sample edge rows (which would read the neighboring sample)
            # are zeroed with an iota mask.
            ridx = lax.broadcasted_iota(jnp.int32, (rows, 1), 0)
            not_first = (ridx % h) != 0
            not_last = (ridx % h) != (h - 1)
            x_dn = jnp.where(not_first, _roll(act, 1, axis=0), 0.0)   # row r-1
            x_up = jnp.where(not_last, _roll(act, -1, axis=0), 0.0)   # row r+1

            # three accumulating GEMMs (bf16 in, f32 acc)
            y = (dot(x_dn.astype(BF16), b0_ref[...])
                 + dot(act.astype(BF16), b1_ref[...])
                 + dot(x_up.astype(BF16), b2_ref[...]))               # (rows, lout)
            z = jnp.maximum(y * s_ref[...] + t_ref[...], 0.0)         # BN2d + ReLU

            sy = sy_refs[l]
            sy[...] = z
            # exact 2x row pooling via sublane-strided reads; even/odd pairs
            # never cross sample boundaries because h is even.
            rmax = jnp.maximum(sy[pl.ds(0, Bt * hh, stride=2), :],
                               sy[pl.ds(1, Bt * hh, stride=2), :])    # (Bt*hh, lout)
            if l < n_conv - 1:
                # lazy 2x column pooling via a lane roll; odd / stripe-edge
                # lanes hold finite junk masked by zero rows in the next
                # layer's banded tap weights.
                act = jnp.maximum(rmax, _roll(rmax, -1, axis=1))

        # rmax: (Bt*hf, lr); lanes = c*wr + col (last column pool still lazy)
        srm_ref[...] = rmax

        # ---------------- SPP (adaptive max pools) ----------------
        # Bin (i, j) of scale (oh, ow) = max over rmax rows [i*kh, (i+1)*kh) of
        # the sample and a lane window of width 2*kw starting at c*wr + 2*j*kw.
        spp_rows = []
        for (oh, ow) in spp_sizes:
            kh = hf // oh
            kw = wf // ow
            width = 2 * kw
            for i in range(oh):
                rr = srm_ref[pl.ds(i * kh, Bt, stride=hf), :]          # (Bt, lr)
                for t in range(1, kh):
                    rr = jnp.maximum(
                        rr, srm_ref[pl.ds(i * kh + t, Bt, stride=hf), :])
                acc = rr
                if width & (width - 1) == 0:
                    s = 1
                    while s < width:                 # log2 roll tree
                        acc = jnp.maximum(acc, _roll(acc, -s, axis=1))
                        s *= 2
                else:
                    for t in range(1, width):        # fallback linear chain
                        acc = jnp.maximum(acc, _roll(rr, -t, axis=1))
                spp_rows.append(acc)                 # (Bt, lr)

        # ---------------- linear stack ----------------
        # The first linear GEMM consumes the SPP feature straight from
        # registers as a sum of per-row-group partial GEMMs; the PyTorch
        # feature-order permutation and the junk lanes are folded into
        # zero rows of the (padded) weight matrix.
        def spp_dot(w_ref):
            acc = None
            for r, v in enumerate(spp_rows):
                part = dot(v.astype(BF16), w_ref[r * lr:(r + 1) * lr, :])
                acc = part if acc is None else acc + part
            return acc

        if n_hidden > 0:
            w_ref, s_ref, t_ref = lin_w[0]
            feat = jnp.maximum(spp_dot(w_ref) * s_ref[...] + t_ref[...], 0.0)
            for (w_ref, s_ref, t_ref) in lin_w[1:]:
                y = dot(feat.astype(BF16), w_ref[...])
                feat = jnp.maximum(y * s_ref[...] + t_ref[...], 0.0)   # BN1d+ReLU
            out = dot(feat.astype(BF16), wlast_ref[...]) + blast_ref[...]
        else:
            out = spp_dot(wlast_ref) + blast_ref[...]
        out_ref[...] = out                                   # (Bt, dpad) dense

    return kernel


# ---------------------------------------------------------------------------
# Deterministic parameter construction (synthetic; no checkpoint load)
# ---------------------------------------------------------------------------
def build_conv_banded_taps(Wt, c):
    """Per-vertical-tap banded conv weights, each (lb, lout)."""
    cin, cout = c['cin'], c['cout']
    w, wb, step, lb, lout = c['w'], c['wb'], c['step'], c['lb'], c['lout']
    taps = []
    for dy in range(3):
        B = np.zeros((lb, lout), np.float32)
        for dx in range(3):
            for wo in range(w):
                wi = wo + dx - 1
                if 0 <= wi < w:
                    for ci in range(cin):
                        B[ci * wb + step * wi, wo::w] = Wt[:, ci, dy, dx]
        taps.append(B)
    return taps


def _pad128(d):
    return ((int(d) + 127) // 128) * 128


def init_params(key, cfg):
    params = {'conv': [], 'linear': []}
    kconv, klin = jax.random.split(key)
    cks = jax.random.split(kconv, len(cfg['conv']))
    for c, ck in zip(cfg['conv'], cks):
        kk = jax.random.split(ck, 6)
        cout, cin = c['cout'], c['cin']
        Wt = 0.2 * jax.random.normal(kk[0], (cout, cin, 3, 3), F32)   # OIHW
        bias = 0.1 * jax.random.normal(kk[1], (cout,), F32)
        gamma = 1.0 + 0.1 * jax.random.normal(kk[2], (cout,), F32)
        beta = 0.1 * jax.random.normal(kk[3], (cout,), F32)
        rmean = 0.1 * jax.random.normal(kk[4], (cout,), F32)
        rvar = jax.random.uniform(kk[5], (cout,), F32, minval=0.5, maxval=1.5)
        taps = build_conv_banded_taps(np.asarray(Wt), c)
        # fold conv bias + eval-mode BatchNorm2d into per-channel affine
        scale_c = np.asarray(gamma) / np.sqrt(np.asarray(rvar) + EPS)
        shift_c = np.asarray(beta) + (np.asarray(bias) - np.asarray(rmean)) * scale_c
        params['conv'].append({
            'B': [jnp.asarray(t, BF16) for t in taps],
            'scale': jnp.asarray(np.repeat(scale_c, c['w'])[None, :], F32),
            'shift': jnp.asarray(np.repeat(shift_c, c['w'])[None, :], F32),
        })

    # linear stack: dims == CNN_SPP_Net.linear_dims, lane-padded to 128
    dims = (cfg['torch_feat'],) + cfg['linear_sizes']
    lanes = spp_lane_index(cfg)
    lks = jax.random.split(klin, len(dims) - 1)
    prev_kdim = cfg['feat_w']
    for i in range(len(dims) - 1):
        din, dout = int(dims[i]), int(dims[i + 1])
        dout_k = _pad128(dout)
        kk = jax.random.split(lks[i], 5)
        Wl = np.asarray(jax.random.normal(kk[0], (din, dout), F32)) / np.sqrt(din)
        b = 0.1 * np.ones((dout,), np.float32)   # mirrors init_weights() bias fill
        Wk = np.zeros((prev_kdim, dout_k), np.float32)
        if i == 0:
            # scatter the PyTorch-ordered rows into the kernel's SPP feature
            # layout; unused / junk feature lanes keep zero rows.
            Wk[lanes, :dout] = Wl
        else:
            Wk[:din, :dout] = Wl
        if i < len(dims) - 2:
            gamma = np.asarray(1.0 + 0.1 * jax.random.normal(kk[1], (dout,), F32))
            beta = np.asarray(0.1 * jax.random.normal(kk[2], (dout,), F32))
            rmean = np.asarray(0.1 * jax.random.normal(kk[3], (dout,), F32))
            rvar = np.asarray(jax.random.uniform(kk[4], (dout,), F32,
                                                 minval=0.5, maxval=1.5))
            scale = gamma / np.sqrt(rvar + EPS)
            shift = beta + (b - rmean) * scale
            scale_k = np.zeros((1, dout_k), np.float32); scale_k[0, :dout] = scale
            shift_k = np.zeros((1, dout_k), np.float32); shift_k[0, :dout] = shift
            params['linear'].append({'W': jnp.asarray(Wk, BF16),
                                     'scale': jnp.asarray(scale_k),
                                     'shift': jnp.asarray(shift_k)})
        else:
            b_k = np.zeros((1, dout_k), np.float32); b_k[0, :dout] = b
            params['linear'].append({'W': jnp.asarray(Wk, BF16),
                                     'b': jnp.asarray(b_k)})
        prev_kdim = dout_k
    return params


# ---------------------------------------------------------------------------
# Forward pass (matches CNN_SPP_Net.forward, eval-mode BatchNorm)
# ---------------------------------------------------------------------------
def cnn_spp_forward(x_nchw, params, cfg, block_batch=16):
    N, C0, H, W = x_nchw.shape
    # Batch tile: amortizes per-step overhead / fills the MXU M dim.  At large
    # N this keeps >= 2 grid steps so both v7x TensorCores stay busy; per-step
    # VMEM use is < 1 MiB so the default scoped limit is plenty.
    Bt = int(min(N, block_batch))
    n_blocks = -(-N // Bt)
    Npad = n_blocks * Bt
    L0 = C0 * W

    # NCHW -> (N*H, C*W): rows = (sample, height), lanes = channel-major (c, w)
    xr = jnp.transpose(x_nchw.astype(F32), (0, 2, 1, 3)).reshape(N * H, L0)
    xr = jnp.pad(xr, ((0, (Npad - N) * H), (0, 0)))

    flat_inputs = [xr]
    in_specs = [pl.BlockSpec((Bt * H, L0), lambda n: (n, 0))]

    def add_const(a):
        flat_inputs.append(a)
        in_specs.append(pl.BlockSpec(a.shape, lambda n, nd=a.ndim: (0,) * nd))

    for layer in params['conv']:
        for tap in layer['B']:
            add_const(tap)
        add_const(layer['scale'])
        add_const(layer['shift'])
    for layer in params['linear'][:-1]:
        add_const(layer['W']); add_const(layer['scale']); add_const(layer['shift'])
    add_const(params['linear'][-1]['W'])
    add_const(params['linear'][-1]['b'])

    dpad = params['linear'][-1]['W'].shape[1]     # lane-dense (multiple of 128)

    scratch = [pltpu.VMEM((Bt * c['h'], c['lout']), jnp.float32)
               for c in cfg['conv']]
    scratch.append(pltpu.VMEM((Bt * cfg['hf'], cfg['lr']), jnp.float32))

    out = pl.pallas_call(
        make_fused_kernel(cfg, Bt),
        grid=(n_blocks,),
        in_specs=in_specs,
        out_specs=pl.BlockSpec((Bt, dpad), lambda n: (n, 0)),
        out_shape=jax.ShapeDtypeStruct((Npad, dpad), jnp.float32),
        scratch_shapes=scratch,
        compiler_params=pltpu.CompilerParams(
            dimension_semantics=("parallel",)),
    )(*flat_inputs)
    return out[:N, :cfg['num_classes']]


if __name__ == "__main__":
    hyper = {
        'cnn_channels': (4, 8, 16),
        'spp_output_sizes': [(4, 4), (2, 2), (1, 1)],
        'linear_output_sizes': (32, 10),
    }
    N, Cin, H, W = 2, 4, 16, 16

    cfg = make_config(hyper['cnn_channels'], hyper['spp_output_sizes'],
                      hyper['linear_output_sizes'], H, W)

    key = jax.random.PRNGKey(0)
    kx, kp = jax.random.split(key)
    x = jax.random.normal(kx, (N, Cin, H, W), F32)   # NCHW, like PyTorch
    params = init_params(kp, cfg)

    out = cnn_spp_forward(x, params, cfg)
    out = jax.block_until_ready(out)

    assert out.shape == (N, hyper['linear_output_sizes'][-1]), out.shape
    assert bool(jnp.all(jnp.isfinite(out)))
    print("KERNEL_OK")
</pallas_src>

<mosaic_0001>
module attributes {stable_mosaic.version = 11 : i64} {
  func.func @kernel(%arg0: i32, %arg1: memref<32x64xf32, #tpu.memory_space<vmem>>, %arg2: memref<64x128xbf16, #tpu.memory_space<vmem>>, %arg3: memref<64x128xbf16, #tpu.memory_space<vmem>>, %arg4: memref<64x128xbf16, #tpu.memory_space<vmem>>, %arg5: memref<1x128xf32, #tpu.memory_space<vmem>>, %arg6: memref<1x128xf32, #tpu.memory_space<vmem>>, %arg7: memref<128x128xbf16, #tpu.memory_space<vmem>>, %arg8: memref<128x128xbf16, #tpu.memory_space<vmem>>, %arg9: memref<128x128xbf16, #tpu.memory_space<vmem>>, %arg10: memref<1x128xf32, #tpu.memory_space<vmem>>, %arg11: memref<1x128xf32, #tpu.memory_space<vmem>>, %arg12: memref<896x128xbf16, #tpu.memory_space<vmem>>, %arg13: memref<1x128xf32, #tpu.memory_space<vmem>>, %arg14: memref<1x128xf32, #tpu.memory_space<vmem>>, %arg15: memref<128x128xbf16, #tpu.memory_space<vmem>>, %arg16: memref<1x128xf32, #tpu.memory_space<vmem>>, %arg17: memref<2x128xf32, #tpu.memory_space<vmem>>, %arg18: memref<32x128xf32, #tpu.memory_space<vmem>>, %arg19: memref<16x128xf32, #tpu.memory_space<vmem>>, %arg20: memref<8x128xf32, #tpu.memory_space<vmem>>) attributes {dimension_semantics = [#tpu.dimension_semantics<parallel>], iteration_bounds = array<i64: 1>, scalar_prefetch = 0 : i64, scratch_operands = 3 : i64, tpu.core_type = #tpu.core_type<tc>, window_params = [{transform_indices = @transform_0, window_bounds = array<i64: 32, 64>}, {pipeline_mode = #tpu.pipeline_mode<synchronous>, transform_indices = @transform_1, window_bounds = array<i64: 64, 128>}, {pipeline_mode = #tpu.pipeline_mode<synchronous>, transform_indices = @transform_2, window_bounds = array<i64: 64, 128>}, {pipeline_mode = #tpu.pipeline_mode<synchronous>, transform_indices = @transform_3, window_bounds = array<i64: 64, 128>}, {pipeline_mode = #tpu.pipeline_mode<synchronous>, transform_indices = @transform_4, window_bounds = array<i64: 1, 128>}, {pipeline_mode = #tpu.pipeline_mode<synchronous>, transform_indices = @transform_5, window_bounds = array<i64: 1, 128>}, {pipeline_mode = #tpu.pipeline_mode<synchronous>, transform_indices = @transform_6, window_bounds = array<i64: 128, 128>}, {pipeline_mode = #tpu.pipeline_mode<synchronous>, transform_indices = @transform_7, window_bounds = array<i64: 128, 128>}, {pipeline_mode = #tpu.pipeline_mode<synchronous>, transform_indices = @transform_8, window_bounds = array<i64: 128, 128>}, {pipeline_mode = #tpu.pipeline_mode<synchronous>, transform_indices = @transform_9, window_bounds = array<i64: 1, 128>}, {pipeline_mode = #tpu.pipeline_mode<synchronous>, transform_indices = @transform_10, window_bounds = array<i64: 1, 128>}, {pipeline_mode = #tpu.pipeline_mode<synchronous>, transform_indices = @transform_11, window_bounds = array<i64: 896, 128>}, {pipeline_mode = #tpu.pipeline_mode<synchronous>, transform_indices = @transform_12, window_bounds = array<i64: 1, 128>}, {pipeline_mode = #tpu.pipeline_mode<synchronous>, transform_indices = @transform_13, window_bounds = array<i64: 1, 128>}, {pipeline_mode = #tpu.pipeline_mode<synchronous>, transform_indices = @transform_14, window_bounds = array<i64: 128, 128>}, {pipeline_mode = #tpu.pipeline_mode<synchronous>, transform_indices = @transform_15, window_bounds = array<i64: 1, 128>}, {transform_indices = @transform_16, window_bounds = array<i64: 2, 128>}]} {
    %c0 = arith.constant 0 : index
    %c0_0 = arith.constant 0 : index
    %0 = vector.load %arg1[%c0, %c0_0] : memref<32x64xf32, #tpu.memory_space<vmem>>, vector<32x64xf32>
    %1 = tpu.iota {dimensions = array<i32: 0>} : vector<32x1xi32>
    %c16_i32 = arith.constant 16 : i32
    %c0_i32 = arith.constant 0 : i32
    %2 = arith.cmpi eq, %c16_i32, %c0_i32 : i32
    %c1_i32 = arith.constant 1 : i32
    %3 = arith.select %2, %c1_i32, %c16_i32 : i32
    %4 = vector.broadcast %3 : i32 to vector<32x1xi32>
    %5 = arith.remsi %1, %4 : vector<32x1xi32>
    %c0_i32_1 = arith.constant 0 : i32
    %6 = vector.broadcast %c0_i32_1 : i32 to vector<32x1xi32>
    %7 = arith.cmpi ne, %5, %6 : vector<32x1xi32>
    %c0_i32_2 = arith.constant 0 : i32
    %8 = vector.broadcast %c0_i32_2 : i32 to vector<32x1xi32>
    %9 = arith.cmpi slt, %5, %8 : vector<32x1xi32>
    %c0_i32_3 = arith.constant 0 : i32
    %10 = arith.cmpi slt, %3, %c0_i32_3 : i32
    %11 = vector.broadcast %10 : i1 to vector<32x1xi1>
    %12 = vector.broadcast %11 : vector<32x1xi1> to vector<32x1xi1>
    %13 = arith.xori %9, %12 : vector<32x1xi1>
    %14 = arith.andi %13, %7 : vector<32x1xi1>
    %15 = vector.broadcast %3 : i32 to vector<32x1xi32>
    %16 = arith.addi %5, %15 : vector<32x1xi32>
    %17 = arith.select %14, %16, %5 : vector<32x1xi1>, vector<32x1xi32>
    %c0_i32_4 = arith.constant 0 : i32
    %18 = vector.broadcast %c0_i32_4 : i32 to vector<32x1xi32>
    %19 = arith.cmpi ne, %17, %18 : vector<32x1xi32>
    %c16_i32_5 = arith.constant 16 : i32
    %c0_i32_6 = arith.constant 0 : i32
    %20 = arith.cmpi eq, %c16_i32_5, %c0_i32_6 : i32
    %c1_i32_7 = arith.constant 1 : i32
    %21 = arith.select %20, %c1_i32_7, %c16_i32_5 : i32
    %22 = vector.broadcast %21 : i32 to vector<32x1xi32>
    %23 = arith.remsi %1, %22 : vector<32x1xi32>
    %c0_i32_8 = arith.constant 0 : i32
    %24 = vector.broadcast %c0_i32_8 : i32 to vector<32x1xi32>
    %25 = arith.cmpi ne, %23, %24 : vector<32x1xi32>
    %c0_i32_9 = arith.constant 0 : i32
    %26 = vector.broadcast %c0_i32_9 : i32 to vector<32x1xi32>
    %27 = arith.cmpi slt, %23, %26 : vector<32x1xi32>
    %c0_i32_10 = arith.constant 0 : i32
    %28 = arith.cmpi slt, %21, %c0_i32_10 : i32
    %29 = vector.broadcast %28 : i1 to vector<32x1xi1>
    %30 = vector.broadcast %29 : vector<32x1xi1> to vector<32x1xi1>
    %31 = arith.xori %27, %30 : vector<32x1xi1>
    %32 = arith.andi %31, %25 : vector<32x1xi1>
    %33 = vector.broadcast %21 : i32 to vector<32x1xi32>
    %34 = arith.addi %23, %33 : vector<32x1xi32>
    %35 = arith.select %32, %34, %23 : vector<32x1xi1>, vector<32x1xi32>
    %c15_i32 = arith.constant 15 : i32
    %36 = vector.broadcast %c15_i32 : i32 to vector<32x1xi32>
    %37 = arith.cmpi ne, %35, %36 : vector<32x1xi32>
    %c1_i32_11 = arith.constant 1 : i32
    %38 = tpu.dynamic_rotate %0 by %c1_i32_11 dim 0 : vector<32x64xf32>, i32 -> vector<32x64xf32>
    %cst = arith.constant 0.000000e+00 : f32
    %39 = vector.shape_cast %19 : vector<32x1xi1> to vector<32x1xi1>
    %40 = vector.broadcast %39 : vector<32x1xi1> to vector<32x64xi1>
    %41 = vector.broadcast %cst : f32 to vector<32x64xf32>
    %42 = arith.select %40, %38, %41 : vector<32x64xi1>, vector<32x64xf32>
    %c31_i32 = arith.constant 31 : i32
    %43 = tpu.dynamic_rotate %0 by %c31_i32 dim 0 : vector<32x64xf32>, i32 -> vector<32x64xf32>
    %cst_12 = arith.constant 0.000000e+00 : f32
    %44 = vector.shape_cast %37 : vector<32x1xi1> to vector<32x1xi1>
    %45 = vector.broadcast %44 : vector<32x1xi1> to vector<32x64xi1>
    %46 = vector.broadcast %cst_12 : f32 to vector<32x64xf32>
    %47 = arith.select %45, %43, %46 : vector<32x64xi1>, vector<32x64xf32>
    %48 = arith.truncf %42 : vector<32x64xf32> to vector<32x64xbf16>
    %c0_13 = arith.constant 0 : index
    %c0_14 = arith.constant 0 : index
    %49 = vector.load %arg2[%c0_13, %c0_14] : memref<64x128xbf16, #tpu.memory_space<vmem>>, vector<64x128xbf16>
    %cst_15 = arith.constant dense<0.000000e+00> : vector<32x128xf32>
    %50 = tpu.matmul %48, %49, %cst_15 {dimension_numbers = #tpu.dot_dimension_numbers<[1], [0], [0], [1], [0, 0, 1, 1], [], []>} : vector<32x64xbf16>, vector<64x128xbf16>, vector<32x128xf32> -> vector<32x128xf32>
    %51 = arith.truncf %0 : vector<32x64xf32> to vector<32x64xbf16>
    %c0_16 = arith.constant 0 : index
    %c0_17 = arith.constant 0 : index
    %52 = vector.load %arg3[%c0_16, %c0_17] : memref<64x128xbf16, #tpu.memory_space<vmem>>, vector<64x128xbf16>
    %cst_18 = arith.constant dense<0.000000e+00> : vector<32x128xf32>
    %53 = tpu.matmul %51, %52, %cst_18 {dimension_numbers = #tpu.dot_dimension_numbers<[1], [0], [0], [1], [0, 0, 1, 1], [], []>} : vector<32x64xbf16>, vector<64x128xbf16>, vector<32x128xf32> -> vector<32x128xf32>
    %54 = arith.addf %50, %53 : vector<32x128xf32>
    %55 = arith.truncf %47 : vector<32x64xf32> to vector<32x64xbf16>
    %c0_19 = arith.constant 0 : index
    %c0_20 = arith.constant 0 : index
    %56 = vector.load %arg4[%c0_19, %c0_20] : memref<64x128xbf16, #tpu.memory_space<vmem>>, vector<64x128xbf16>
    %cst_21 = arith.constant dense<0.000000e+00> : vector<32x128xf32>
    %57 = tpu.matmul %55, %56, %cst_21 {dimension_numbers = #tpu.dot_dimension_numbers<[1], [0], [0], [1], [0, 0, 1, 1], [], []>} : vector<32x64xbf16>, vector<64x128xbf16>, vector<32x128xf32> -> vector<32x128xf32>
    %58 = arith.addf %54, %57 : vector<32x128xf32>
    %c0_22 = arith.constant 0 : index
    %c0_23 = arith.constant 0 : index
    %59 = vector.load %arg5[%c0_22, %c0_23] : memref<1x128xf32, #tpu.memory_space<vmem>>, vector<1x128xf32>
    %60 = vector.broadcast %59 : vector<1x128xf32> to vector<32x128xf32>
    %61 = arith.mulf %58, %60 : vector<32x128xf32>
    %c0_24 = arith.constant 0 : index
    %c0_25 = arith.constant 0 : index
    %62 = vector.load %arg6[%c0_24, %c0_25] : memref<1x128xf32, #tpu.memory_space<vmem>>, vector<1x128xf32>
    %63 = vector.broadcast %62 : vector<1x128xf32> to vector<32x128xf32>
    %64 = arith.addf %61, %63 : vector<32x128xf32>
    %cst_26 = arith.constant 0.000000e+00 : f32
    %65 = vector.broadcast %cst_26 : f32 to vector<32x128xf32>
    %66 = arith.maximumf %64, %65 : vector<32x128xf32>
    %c0_27 = arith.constant 0 : index
    %c0_28 = arith.constant 0 : index
    %67 = vector.load %arg18[%c0_27, %c0_28] : memref<32x128xf32, #tpu.memory_space<vmem>>, vector<32x128xf32>
    tpu.vector_store %arg18[%c0_27, %c0_28], %66 {strides = array<i32>} : memref<32x128xf32, #tpu.memory_space<vmem>>, vector<32x128xf32>,
    %c0_29 = arith.constant 0 : index
    %c0_30 = arith.constant 0 : index
    %68 = tpu.strided_load %arg18[%c0_29, %c0_30] {strides = array<i32: 2, 1>} : memref<32x128xf32, #tpu.memory_space<vmem>>, vector<16x128xf32>
    %c1 = arith.constant 1 : index
    %c0_31 = arith.constant 0 : index
    %69 = tpu.strided_load %arg18[%c1, %c0_31] {strides = array<i32: 2, 1>} : memref<32x128xf32, #tpu.memory_space<vmem>>, vector<16x128xf32>
    %70 = arith.maximumf %68, %69 : vector<16x128xf32>
    %c127_i32 = arith.constant 127 : i32
    %71 = tpu.dynamic_rotate %70 by %c127_i32 dim 1 : vector<16x128xf32>, i32 -> vector<16x128xf32>
    %72 = arith.maximumf %70, %71 : vector<16x128xf32>
    %73 = tpu.iota {dimensions = array<i32: 0>} : vector<16x1xi32>
    %c8_i32 = arith.constant 8 : i32
    %c0_i32_32 = arith.constant 0 : i32
    %74 = arith.cmpi eq, %c8_i32, %c0_i32_32 : i32
    %c1_i32_33 = arith.constant 1 : i32
    %75 = arith.select %74, %c1_i32_33, %c8_i32 : i32
    %76 = vector.broadcast %75 : i32 to vector<16x1xi32>
    %77 = arith.remsi %73, %76 : vector<16x1xi32>
    %c0_i32_34 = arith.constant 0 : i32
    %78 = vector.broadcast %c0_i32_34 : i32 to vector<16x1xi32>
    %79 = arith.cmpi ne, %77, %78 : vector<16x1xi32>
    %c0_i32_35 = arith.constant 0 : i32
    %80 = vector.broadcast %c0_i32_35 : i32 to vector<16x1xi32>
    %81 = arith.cmpi slt, %77, %80 : vector<16x1xi32>
    %c0_i32_36 = arith.constant 0 : i32
    %82 = arith.cmpi slt, %75, %c0_i32_36 : i32
    %83 = vector.broadcast %82 : i1 to vector<16x1xi1>
    %84 = vector.broadcast %83 : vector<16x1xi1> to vector<16x1xi1>
    %85 = arith.xori %81, %84 : vector<16x1xi1>
    %86 = arith.andi %85, %79 : vector<16x1xi1>
    %87 = vector.broadcast %75 : i32 to vector<16x1xi32>
    %88 = arith.addi %77, %87 : vector<16x1xi32>
    %89 = arith.select %86, %88, %77 : vector<16x1xi1>, vector<16x1xi32>
    %c0_i32_37 = arith.constant 0 : i32
    %90 = vector.broadcast %c0_i32_37 : i32 to vector<16x1xi32>
    %91 = arith.cmpi ne, %89, %90 : vector<16x1xi32>
    %c8_i32_38 = arith.constant 8 : i32
    %c0_i32_39 = arith.constant 0 : i32
    %92 = arith.cmpi eq, %c8_i32_38, %c0_i32_39 : i32
    %c1_i32_40 = arith.constant 1 : i32
    %93 = arith.select %92, %c1_i32_40, %c8_i32_38 : i32
    %94 = vector.broadcast %93 : i32 to vector<16x1xi32>
    %95 = arith.remsi %73, %94 : vector<16x1xi32>
    %c0_i32_41 = arith.constant 0 : i32
    %96 = vector.broadcast %c0_i32_41 : i32 to vector<16x1xi32>
    %97 = arith.cmpi ne, %95, %96 : vector<16x1xi32>
    %c0_i32_42 = arith.constant 0 : i32
    %98 = vector.broadcast %c0_i32_42 : i32 to vector<16x1xi32>
    %99 = arith.cmpi slt, %95, %98 : vector<16x1xi32>
    %c0_i32_43 = arith.constant 0 : i32
    %100 = arith.cmpi slt, %93, %c0_i32_43 : i32
    %101 = vector.broadcast %100 : i1 to vector<16x1xi1>
    %102 = vector.broadcast %101 : vector<16x1xi1> to vector<16x1xi1>
    %103 = arith.xori %99, %102 : vector<16x1xi1>
    %104 = arith.andi %103, %97 : vector<16x1xi1>
    %105 = vector.broadcast %93 : i32 to vector<16x1xi32>
    %106 = arith.addi %95, %105 : vector<16x1xi32>
    %107 = arith.select %104, %106, %95 : vector<16x1xi1>, vector<16x1xi32>
    %c7_i32 = arith.constant 7 : i32
    %108 = vector.broadcast %c7_i32 : i32 to vector<16x1xi32>
    %109 = arith.cmpi ne, %107, %108 : vector<16x1xi32>
    %c1_i32_44 = arith.constant 1 : i32
    %110 = tpu.dynamic_rotate %72 by %c1_i32_44 dim 0 : vector<16x128xf32>, i32 -> vector<16x128xf32>
    %cst_45 = arith.constant 0.000000e+00 : f32
    %111 = vector.shape_cast %91 : vector<16x1xi1> to vector<16x1xi1>
    %112 = vector.broadcast %111 : vector<16x1xi1> to vector<16x128xi1>
    %113 = vector.broadcast %cst_45 : f32 to vector<16x128xf32>
    %114 = arith.select %112, %110, %113 : vector<16x128xi1>, vector<16x128xf32>
    %c15_i32_46 = arith.constant 15 : i32
    %115 = tpu.dynamic_rotate %72 by %c15_i32_46 dim 0 : vector<16x128xf32>, i32 -> vector<16x128xf32>
    %cst_47 = arith.constant 0.000000e+00 : f32
    %116 = vector.shape_cast %109 : vector<16x1xi1> to vector<16x1xi1>
    %117 = vector.broadcast %116 : vector<16x1xi1> to vector<16x128xi1>
    %118 = vector.broadcast %cst_47 : f32 to vector<16x128xf32>
    %119 = arith.select %117, %115, %118 : vector<16x128xi1>, vector<16x128xf32>
    %120 = arith.truncf %114 : vector<16x128xf32> to vector<16x128xbf16>
    %c0_48 = arith.constant 0 : index
    %c0_49 = arith.constant 0 : index
    %121 = vector.load %arg7[%c0_48, %c0_49] : memref<128x128xbf16, #tpu.memory_space<vmem>>, vector<128x128xbf16>
    %cst_50 = arith.constant dense<0.000000e+00> : vector<16x128xf32>
    %122 = tpu.matmul %120, %121, %cst_50 {dimension_numbers = #tpu.dot_dimension_numbers<[1], [0], [0], [1], [0, 0, 1, 1], [], []>} : vector<16x128xbf16>, vector<128x128xbf16>, vector<16x128xf32> -> vector<16x128xf32>
    %123 = arith.truncf %72 : vector<16x128xf32> to vector<16x128xbf16>
    %c0_51 = arith.constant 0 : index
    %c0_52 = arith.constant 0 : index
    %124 = vector.load %arg8[%c0_51, %c0_52] : memref<128x128xbf16, #tpu.memory_space<vmem>>, vector<128x128xbf16>
    %cst_53 = arith.constant dense<0.000000e+00> : vector<16x128xf32>
    %125 = tpu.matmul %123, %124, %cst_53 {dimension_numbers = #tpu.dot_dimension_numbers<[1], [0], [0], [1], [0, 0, 1, 1], [], []>} : vector<16x128xbf16>, vector<128x128xbf16>, vector<16x128xf32> -> vector<16x128xf32>
    %126 = arith.addf %122, %125 : vector<16x128xf32>
    %127 = arith.truncf %119 : vector<16x128xf32> to vector<16x128xbf16>
    %c0_54 = arith.constant 0 : index
    %c0_55 = arith.constant 0 : index
    %128 = vector.load %arg9[%c0_54, %c0_55] : memref<128x128xbf16, #tpu.memory_space<vmem>>, vector<128x128xbf16>
    %cst_56 = arith.constant dense<0.000000e+00> : vector<16x128xf32>
    %129 = tpu.matmul %127, %128, %cst_56 {dimension_numbers = #tpu.dot_dimension_numbers<[1], [0], [0], [1], [0, 0, 1, 1], [], []>} : vector<16x128xbf16>, vector<128x128xbf16>, vector<16x128xf32> -> vector<16x128xf32>
    %130 = arith.addf %126, %129 : vector<16x128xf32>
    %c0_57 = arith.constant 0 : index
    %c0_58 = arith.constant 0 : index
    %131 = vector.load %arg10[%c0_57, %c0_58] : memref<1x128xf32, #tpu.memory_space<vmem>>, vector<1x128xf32>
    %132 = vector.broadcast %131 : vector<1x128xf32> to vector<16x128xf32>
    %133 = arith.mulf %130, %132 : vector<16x128xf32>
    %c0_59 = arith.constant 0 : index
    %c0_60 = arith.constant 0 : index
    %134 = vector.load %arg11[%c0_59, %c0_60] : memref<1x128xf32, #tpu.memory_space<vmem>>, vector<1x128xf32>
    %135 = vector.broadcast %134 : vector<1x128xf32> to vector<16x128xf32>
    %136 = arith.addf %133, %135 : vector<16x128xf32>
    %cst_61 = arith.constant 0.000000e+00 : f32
    %137 = vector.broadcast %cst_61 : f32 to vector<16x128xf32>
    %138 = arith.maximumf %136, %137 : vector<16x128xf32>
    %c0_62 = arith.constant 0 : index
    %c0_63 = arith.constant 0 : index
    %139 = vector.load %arg19[%c0_62, %c0_63] : memref<16x128xf32, #tpu.memory_space<vmem>>, vector<16x128xf32>
    tpu.vector_store %arg19[%c0_62, %c0_63], %138 {strides = array<i32>} : memref<16x128xf32, #tpu.memory_space<vmem>>, vector<16x128xf32>,
    %c0_64 = arith.constant 0 : index
    %c0_65 = arith.constant 0 : index
    %140 = tpu.strided_load %arg19[%c0_64, %c0_65] {strides = array<i32: 2, 1>} : memref<16x128xf32, #tpu.memory_space<vmem>>, vector<8x128xf32>
    %c1_66 = arith.constant 1 : index
    %c0_67 = arith.constant 0 : index
    %141 = tpu.strided_load %arg19[%c1_66, %c0_67] {strides = array<i32: 2, 1>} : memref<16x128xf32, #tpu.memory_space<vmem>>, vector<8x128xf32>
    %142 = arith.maximumf %140, %141 : vector<8x128xf32>
    %c0_68 = arith.constant 0 : index
    %c0_69 = arith.constant 0 : index
    %143 = vector.load %arg20[%c0_68, %c0_69] : memref<8x128xf32, #tpu.memory_space<vmem>>, vector<8x128xf32>
    tpu.vector_store %arg20[%c0_68, %c0_69], %142 {strides = array<i32>} : memref<8x128xf32, #tpu.memory_space<vmem>>, vector<8x128xf32>,
    %c0_70 = arith.constant 0 : index
    %c0_71 = arith.constant 0 : index
    %144 = tpu.strided_load %arg20[%c0_70, %c0_71] {strides = array<i32: 4, 1>} : memref<8x128xf32, #tpu.memory_space<vmem>>, vector<2x128xf32>
    %c127_i32_72 = arith.constant 127 : i32
    %145 = tpu.dynamic_rotate %144 by %c127_i32_72 dim 1 : vector<2x128xf32>, i32 -> vector<2x128xf32>
    %146 = arith.maximumf %144, %145 : vector<2x128xf32>
    %c1_73 = arith.constant 1 : index
    %c0_74 = arith.constant 0 : index
    %147 = tpu.strided_load %arg20[%c1_73, %c0_74] {strides = array<i32: 4, 1>} : memref<8x128xf32, #tpu.memory_space<vmem>>, vector<2x128xf32>
    %c127_i32_75 = arith.constant 127 : i32
    %148 = tpu.dynamic_rotate %147 by %c127_i32_75 dim 1 : vector<2x128xf32>, i32 -> vector<2x128xf32>
    %149 = arith.maximumf %147, %148 : vector<2x128xf32>
    %c2 = arith.constant 2 : index
    %c0_76 = arith.constant 0 : index
    %150 = tpu.strided_load %arg20[%c2, %c0_76] {strides = array<i32: 4, 1>} : memref<8x128xf32, #tpu.memory_space<vmem>>, vector<2x128xf32>
    %c127_i32_77 = arith.constant 127 : i32
    %151 = tpu.dynamic_rotate %150 by %c127_i32_77 dim 1 : vector<2x128xf32>, i32 -> vector<2x128xf32>
    %152 = arith.maximumf %150, %151 : vector<2x128xf32>
    %c3 = arith.constant 3 : index
    %c0_78 = arith.constant 0 : index
    %153 = tpu.strided_load %arg20[%c3, %c0_78] {strides = array<i32: 4, 1>} : memref<8x128xf32, #tpu.memory_space<vmem>>, vector<2x128xf32>
    %c127_i32_79 = arith.constant 127 : i32
    %154 = tpu.dynamic_rotate %153 by %c127_i32_79 dim 1 : vector<2x128xf32>, i32 -> vector<2x128xf32>
    %155 = arith.maximumf %153, %154 : vector<2x128xf32>
    %c0_80 = arith.constant 0 : index
    %c0_81 = arith.constant 0 : index
    %156 = tpu.strided_load %arg20[%c0_80, %c0_81] {strides = array<i32: 4, 1>} : memref<8x128xf32, #tpu.memory_space<vmem>>, vector<2x128xf32>
    %c1_82 = arith.constant 1 : index
    %c0_83 = arith.constant 0 : index
    %157 = tpu.strided_load %arg20[%c1_82, %c0_83] {strides = array<i32: 4, 1>} : memref<8x128xf32, #tpu.memory_space<vmem>>, vector<2x128xf32>
    %158 = arith.maximumf %156, %157 : vector<2x128xf32>
    %c127_i32_84 = arith.constant 127 : i32
    %159 = tpu.dynamic_rotate %158 by %c127_i32_84 dim 1 : vector<2x128xf32>, i32 -> vector<2x128xf32>
    %160 = arith.maximumf %158, %159 : vector<2x128xf32>
    %c126_i32 = arith.constant 126 : i32
    %161 = tpu.dynamic_rotate %160 by %c126_i32 dim 1 : vector<2x128xf32>, i32 -> vector<2x128xf32>
    %162 = arith.maximumf %160, %161 : vector<2x128xf32>
    %c2_85 = arith.constant 2 : index
    %c0_86 = arith.constant 0 : index
    %163 = tpu.strided_load %arg20[%c2_85, %c0_86] {strides = array<i32: 4, 1>} : memref<8x128xf32, #tpu.memory_space<vmem>>, vector<2x128xf32>
    %c3_87 = arith.constant 3 : index
    %c0_88 = arith.constant 0 : index
    %164 = tpu.strided_load %arg20[%c3_87, %c0_88] {strides = array<i32: 4, 1>} : memref<8x128xf32, #tpu.memory_space<vmem>>, vector<2x128xf32>
    %165 = arith.maximumf %163, %164 : vector<2x128xf32>
    %c127_i32_89 = arith.constant 127 : i32
    %166 = tpu.dynamic_rotate %165 by %c127_i32_89 dim 1 : vector<2x128xf32>, i32 -> vector<2x128xf32>
    %167 = arith.maximumf %165, %166 : vector<2x128xf32>
    %c126_i32_90 = arith.constant 126 : i32
    %168 = tpu.dynamic_rotate %167 by %c126_i32_90 dim 1 : vector<2x128xf32>, i32 -> vector<2x128xf32>
    %169 = arith.maximumf %167, %168 : vector<2x128xf32>
    %c0_91 = arith.constant 0 : index
    %c0_92 = arith.constant 0 : index
    %170 = tpu.strided_load %arg20[%c0_91, %c0_92] {strides = array<i32: 4, 1>} : memref<8x128xf32, #tpu.memory_space<vmem>>, vector<2x128xf32>
    %c1_93 = arith.constant 1 : index
    %c0_94 = arith.constant 0 : index
    %171 = tpu.strided_load %arg20[%c1_93, %c0_94] {strides = array<i32: 4, 1>} : memref<8x128xf32, #tpu.memory_space<vmem>>, vector<2x128xf32>
    %172 = arith.maximumf %170, %171 : vector<2x128xf32>
    %c2_95 = arith.constant 2 : index
    %c0_96 = arith.constant 0 : index
    %173 = tpu.strided_load %arg20[%c2_95, %c0_96] {strides = array<i32: 4, 1>} : memref<8x128xf32, #tpu.memory_space<vmem>>, vector<2x128xf32>
    %174 = arith.maximumf %172, %173 : vector<2x128xf32>
    %c3_97 = arith.constant 3 : index
    %c0_98 = arith.constant 0 : index
    %175 = tpu.strided_load %arg20[%c3_97, %c0_98] {strides = array<i32: 4, 1>} : memref<8x128xf32, #tpu.memory_space<vmem>>, vector<2x128xf32>
    %176 = arith.maximumf %174, %175 : vector<2x128xf32>
    %c127_i32_99 = arith.constant 127 : i32
    %177 = tpu.dynamic_rotate %176 by %c127_i32_99 dim 1 : vector<2x128xf32>, i32 -> vector<2x128xf32>
    %178 = arith.maximumf %176, %177 : vector<2x128xf32>
    %c126_i32_100 = arith.constant 126 : i32
    %179 = tpu.dynamic_rotate %178 by %c126_i32_100 dim 1 : vector<2x128xf32>, i32 -> vector<2x128xf32>
    %180 = arith.maximumf %178, %179 : vector<2x128xf32>
    %c124_i32 = arith.constant 124 : i32
    %181 = tpu.dynamic_rotate %180 by %c124_i32 dim 1 : vector<2x128xf32>, i32 -> vector<2x128xf32>
    %182 = arith.maximumf %180, %181 : vector<2x128xf32>
    %183 = arith.truncf %146 : vector<2x128xf32> to vector<2x128xbf16>
    %c0_101 = arith.constant 0 : index
    %c0_102 = arith.constant 0 : index
    %184 = vector.load %arg12[%c0_101, %c0_102] : memref<896x128xbf16, #tpu.memory_space<vmem>>, vector<128x128xbf16>
    %cst_103 = arith.constant dense<0.000000e+00> : vector<2x128xf32>
    %185 = tpu.matmul %183, %184, %cst_103 {dimension_numbers = #tpu.dot_dimension_numbers<[1], [0], [0], [1], [0, 0, 1, 1], [], []>} : vector<2x128xbf16>, vector<128x128xbf16>, vector<2x128xf32> -> vector<2x128xf32>
    %186 = arith.truncf %149 : vector<2x128xf32> to vector<2x128xbf16>
    %c128 = arith.constant 128 : index
    %c0_104 = arith.constant 0 : index
    %187 = vector.load %arg12[%c128, %c0_104] : memref<896x128xbf16, #tpu.memory_space<vmem>>, vector<128x128xbf16>
    %cst_105 = arith.constant dense<0.000000e+00> : vector<2x128xf32>
    %188 = tpu.matmul %186, %187, %cst_105 {dimension_numbers = #tpu.dot_dimension_numbers<[1], [0], [0], [1], [0, 0, 1, 1], [], []>} : vector<2x128xbf16>, vector<128x128xbf16>, vector<2x128xf32> -> vector<2x128xf32>
    %189 = arith.addf %185, %188 : vector<2x128xf32>
    %190 = arith.truncf %152 : vector<2x128xf32> to vector<2x128xbf16>
    %c256 = arith.constant 256 : index
    %c0_106 = arith.constant 0 : index
    %191 = vector.load %arg12[%c256, %c0_106] : memref<896x128xbf16, #tpu.memory_space<vmem>>, vector<128x128xbf16>
    %cst_107 = arith.constant dense<0.000000e+00> : vector<2x128xf32>
    %192 = tpu.matmul %190, %191, %cst_107 {dimension_numbers = #tpu.dot_dimension_numbers<[1], [0], [0], [1], [0, 0, 1, 1], [], []>} : vector<2x128xbf16>, vector<128x128xbf16>, vector<2x128xf32> -> vector<2x128xf32>
    %193 = arith.addf %189, %192 : vector<2x128xf32>
    %194 = arith.truncf %155 : vector<2x128xf32> to vector<2x128xbf16>
    %c384 = arith.constant 384 : index
    %c0_108 = arith.constant 0 : index
    %195 = vector.load %arg12[%c384, %c0_108] : memref<896x128xbf16, #tpu.memory_space<vmem>>, vector<128x128xbf16>
    %cst_109 = arith.constant dense<0.000000e+00> : vector<2x128xf32>
    %196 = tpu.matmul %194, %195, %cst_109 {dimension_numbers = #tpu.dot_dimension_numbers<[1], [0], [0], [1], [0, 0, 1, 1], [], []>} : vector<2x128xbf16>, vector<128x128xbf16>, vector<2x128xf32> -> vector<2x128xf32>
    %197 = arith.addf %193, %196 : vector<2x128xf32>
    %198 = arith.truncf %162 : vector<2x128xf32> to vector<2x128xbf16>
    %c512 = arith.constant 512 : index
    %c0_110 = arith.constant 0 : index
    %199 = vector.load %arg12[%c512, %c0_110] : memref<896x128xbf16, #tpu.memory_space<vmem>>, vector<128x128xbf16>
    %cst_111 = arith.constant dense<0.000000e+00> : vector<2x128xf32>
    %200 = tpu.matmul %198, %199, %cst_111 {dimension_numbers = #tpu.dot_dimension_numbers<[1], [0], [0], [1], [0, 0, 1, 1], [], []>} : vector<2x128xbf16>, vector<128x128xbf16>, vector<2x128xf32> -> vector<2x128xf32>
    %201 = arith.addf %197, %200 : vector<2x128xf32>
    %202 = arith.truncf %169 : vector<2x128xf32> to vector<2x128xbf16>
    %c640 = arith.constant 640 : index
    %c0_112 = arith.constant 0 : index
    %203 = vector.load %arg12[%c640, %c0_112] : memref<896x128xbf16, #tpu.memory_space<vmem>>, vector<128x128xbf16>
    %cst_113 = arith.constant dense<0.000000e+00> : vector<2x128xf32>
    %204 = tpu.matmul %202, %203, %cst_113 {dimension_numbers = #tpu.dot_dimension_numbers<[1], [0], [0], [1], [0, 0, 1, 1], [], []>} : vector<2x128xbf16>, vector<128x128xbf16>, vector<2x128xf32> -> vector<2x128xf32>
    %205 = arith.addf %201, %204 : vector<2x128xf32>
    %206 = arith.truncf %182 : vector<2x128xf32> to vector<2x128xbf16>
    %c768 = arith.constant 768 : index
    %c0_114 = arith.constant 0 : index
    %207 = vector.load %arg12[%c768, %c0_114] : memref<896x128xbf16, #tpu.memory_space<vmem>>, vector<128x128xbf16>
    %cst_115 = arith.constant dense<0.000000e+00> : vector<2x128xf32>
    %208 = tpu.matmul %206, %207, %cst_115 {dimension_numbers = #tpu.dot_dimension_numbers<[1], [0], [0], [1], [0, 0, 1, 1], [], []>} : vector<2x128xbf16>, vector<128x128xbf16>, vector<2x128xf32> -> vector<2x128xf32>
    %209 = arith.addf %205, %208 : vector<2x128xf32>
    %c0_116 = arith.constant 0 : index
    %c0_117 = arith.constant 0 : index
    %210 = vector.load %arg13[%c0_116, %c0_117] : memref<1x128xf32, #tpu.memory_space<vmem>>, vector<1x128xf32>
    %211 = vector.broadcast %210 : vector<1x128xf32> to vector<2x128xf32>
    %212 = arith.mulf %209, %211 : vector<2x128xf32>
    %c0_118 = arith.constant 0 : index
    %c0_119 = arith.constant 0 : index
    %213 = vector.load %arg14[%c0_118, %c0_119] : memref<1x128xf32, #tpu.memory_space<vmem>>, vector<1x128xf32>
    %214 = vector.broadcast %213 : vector<1x128xf32> to vector<2x128xf32>
    %215 = arith.addf %212, %214 : vector<2x128xf32>
    %cst_120 = arith.constant 0.000000e+00 : f32
    %216 = vector.broadcast %cst_120 : f32 to vector<2x128xf32>
    %217 = arith.maximumf %215, %216 : vector<2x128xf32>
    %218 = arith.truncf %217 : vector<2x128xf32> to vector<2x128xbf16>
    %c0_121 = arith.constant 0 : index
    %c0_122 = arith.constant 0 : index
    %219 = vector.load %arg15[%c0_121, %c0_122] : memref<128x128xbf16, #tpu.memory_space<vmem>>, vector<128x128xbf16>
    %cst_123 = arith.constant dense<0.000000e+00> : vector<2x128xf32>
    %220 = tpu.matmul %218, %219, %cst_123 {dimension_numbers = #tpu.dot_dimension_numbers<[1], [0], [0], [1], [0, 0, 1, 1], [], []>} : vector<2x128xbf16>, vector<128x128xbf16>, vector<2x128xf32> -> vector<2x128xf32>
    %c0_124 = arith.constant 0 : index
    %c0_125 = arith.constant 0 : index
    %221 = vector.load %arg16[%c0_124, %c0_125] : memref<1x128xf32, #tpu.memory_space<vmem>>, vector<1x128xf32>
    %222 = vector.broadcast %221 : vector<1x128xf32> to vector<2x128xf32>
    %223 = arith.addf %220, %222 : vector<2x128xf32>
    %c0_126 = arith.constant 0 : index
    %c0_127 = arith.constant 0 : index
    %224 = vector.load %arg17[%c0_126, %c0_127] : memref<2x128xf32, #tpu.memory_space<vmem>>, vector<2x128xf32>
    tpu.vector_store %arg17[%c0_126, %c0_127], %223 {strides = array<i32>} : memref<2x128xf32, #tpu.memory_space<vmem>>, vector<2x128xf32>,
    return
  }
  func.func @transform_0(%arg0: i32) -> (i32, i32) {
    %c0_i32 = arith.constant 0 : i32
    %c0_i32_0 = arith.constant 0 : i32
    return %arg0, %c0_i32 : i32, i32
  }
  func.func @transform_1(%arg0: i32) -> (i32, i32) {
    %c0_i32 = arith.constant 0 : i32
    %c0_i32_0 = arith.constant 0 : i32
    %c0_i32_1 = arith.constant 0 : i32
    return %c0_i32, %c0_i32_0 : i32, i32
  }
  func.func @transform_2(%arg0: i32) -> (i32, i32) {
    %c0_i32 = arith.constant 0 : i32
    %c0_i32_0 = arith.constant 0 : i32
    %c0_i32_1 = arith.constant 0 : i32
    return %c0_i32, %c0_i32_0 : i32, i32
  }
  func.func @transform_3(%arg0: i32) -> (i32, i32) {
    %c0_i32 = arith.constant 0 : i32
    %c0_i32_0 = arith.constant 0 : i32
    %c0_i32_1 = arith.constant 0 : i32
    return %c0_i32, %c0_i32_0 : i32, i32
  }
  func.func @transform_4(%arg0: i32) -> (i32, i32) {
    %c0_i32 = arith.constant 0 : i32
    %c0_i32_0 = arith.constant 0 : i32
    %c0_i32_1 = arith.constant 0 : i32
    return %c0_i32, %c0_i32_0 : i32, i32
  }
  func.func @transform_5(%arg0: i32) -> (i32, i32) {
    %c0_i32 = arith.constant 0 : i32
    %c0_i32_0 = arith.constant 0 : i32
    %c0_i32_1 = arith.constant 0 : i32
    return %c0_i32, %c0_i32_0 : i32, i32
  }
  func.func @transform_6(%arg0: i32) -> (i32, i32) {
    %c0_i32 = arith.constant 0 : i32
    %c0_i32_0 = arith.constant 0 : i32
    %c0_i32_1 = arith.constant 0 : i32
    return %c0_i32, %c0_i32_0 : i32, i32
  }
  func.func @transform_7(%arg0: i32) -> (i32, i32) {
    %c0_i32 = arith.constant 0 : i32
    %c0_i32_0 = arith.constant 0 : i32
    %c0_i32_1 = arith.constant 0 : i32
    return %c0_i32, %c0_i32_0 : i32, i32
  }
  func.func @transform_8(%arg0: i32) -> (i32, i32) {
    %c0_i32 = arith.constant 0 : i32
    %c0_i32_0 = arith.constant 0 : i32
    %c0_i32_1 = arith.constant 0 : i32
    return %c0_i32, %c0_i32_0 : i32, i32
  }
  func.func @transform_9(%arg0: i32) -> (i32, i32) {
    %c0_i32 = arith.constant 0 : i32
    %c0_i32_0 = arith.constant 0 : i32
    %c0_i32_1 = arith.constant 0 : i32
    return %c0_i32, %c0_i32_0 : i32, i32
  }
  func.func @transform_10(%arg0: i32) -> (i32, i32) {
    %c0_i32 = arith.constant 0 : i32
    %c0_i32_0 = arith.constant 0 : i32
    %c0_i32_1 = arith.constant 0 : i32
    return %c0_i32, %c0_i32_0 : i32, i32
  }
  func.func @transform_11(%arg0: i32) -> (i32, i32) {
    %c0_i32 = arith.constant 0 : i32
    %c0_i32_0 = arith.constant 0 : i32
    %c0_i32_1 = arith.constant 0 : i32
    return %c0_i32, %c0_i32_0 : i32, i32
  }
  func.func @transform_12(%arg0: i32) -> (i32, i32) {
    %c0_i32 = arith.constant 0 : i32
    %c0_i32_0 = arith.constant 0 : i32
    %c0_i32_1 = arith.constant 0 : i32
    return %c0_i32, %c0_i32_0 : i32, i32
  }
  func.func @transform_13(%arg0: i32) -> (i32, i32) {
    %c0_i32 = arith.constant 0 : i32
    %c0_i32_0 = arith.constant 0 : i32
    %c0_i32_1 = arith.constant 0 : i32
    return %c0_i32, %c0_i32_0 : i32, i32
  }
  func.func @transform_14(%arg0: i32) -> (i32, i32) {
    %c0_i32 = arith.constant 0 : i32
    %c0_i32_0 = arith.constant 0 : i32
    %c0_i32_1 = arith.constant 0 : i32
    return %c0_i32, %c0_i32_0 : i32, i32
  }
  func.func @transform_15(%arg0: i32) -> (i32, i32) {
    %c0_i32 = arith.constant 0 : i32
    %c0_i32_0 = arith.constant 0 : i32
    %c0_i32_1 = arith.constant 0 : i32
    return %c0_i32, %c0_i32_0 : i32, i32
  }
  func.func @transform_16(%arg0: i32) -> (i32, i32) {
    %c0_i32 = arith.constant 0 : i32
    %c0_i32_0 = arith.constant 0 : i32
    return %arg0, %c0_i32 : i32, i32
  }
}

</mosaic_0001>

<llo_original>
// kernel: tpu_custom_call.1
$region0: #{tpu_custom_call.1}
  #allocation0 [shape = 'u32[]', space=smem, size = 0x4, offset = 0x4, fixed_abs, tag = 'smem constant byte address 0x4 - core index']
  #allocation1 [shape = 'u32[144,128]{1,0:T(1,128)}', space=vmem, size = 0x12000, scoped, tag = 'internal scratch']
  #allocation2 [shape = 'f32[32,128]{1,0:T(8,128)}', space=vmem, size = 0x4000, scoped, tag = 'scratch operand']
  #allocation3 [shape = 'f32[16,128]{1,0:T(8,128)}', space=vmem, size = 0x2000, scoped, tag = 'scratch operand']
  #allocation4 [shape = 'f32[8,128]{1,0:T(8,128)}', space=vmem, size = 0x1000, scoped, tag = 'scratch operand']
  %s0 = inlined_call_operand.hbm [shape: f32[32,64], index: 0, kind: input, shape index: {}]
  %s1 = inlined_call_operand.hbm [shape: bf16[64,128], index: 1, kind: input, shape index: {}]
  %s2 = inlined_call_operand.hbm [shape: bf16[64,128], index: 2, kind: input, shape index: {}]
  %s3 = inlined_call_operand.hbm [shape: bf16[64,128], index: 3, kind: input, shape index: {}]
  %s4 = inlined_call_operand.vmem [shape: f32[1,128], index: 4, kind: input, shape index: {}]
  %s5 = inlined_call_operand.vmem [shape: f32[1,128], index: 5, kind: input, shape index: {}]
  %s6 = inlined_call_operand.hbm [shape: bf16[128,128], index: 6, kind: input, shape index: {}]
  %s7 = inlined_call_operand.hbm [shape: bf16[128,128], index: 7, kind: input, shape index: {}]
  %s8 = inlined_call_operand.hbm [shape: bf16[128,128], index: 8, kind: input, shape index: {}]
  %s9 = inlined_call_operand.vmem [shape: f32[1,128], index: 9, kind: input, shape index: {}]
  %s10 = inlined_call_operand.vmem [shape: f32[1,128], index: 10, kind: input, shape index: {}]
  %s11 = inlined_call_operand.hbm [shape: bf16[896,128], index: 11, kind: input, shape index: {}]
  %s12 = inlined_call_operand.vmem [shape: f32[1,128], index: 12, kind: input, shape index: {}]
  %s13 = inlined_call_operand.vmem [shape: f32[1,128], index: 13, kind: input, shape index: {}]
  %s14 = inlined_call_operand.hbm [shape: bf16[128,128], index: 14, kind: input, shape index: {}]
  %s15 = inlined_call_operand.vmem [shape: f32[1,128], index: 15, kind: input, shape index: {}]
  %s16 = inlined_call_operand.hbm [shape: f32[2,128], index: 16, kind: output, shape index: {}]
  %s17 = sld [smem:[#allocation0]]
  $region110: #{tpu_custom_call.1} parent=0
    _
  %s19 = ssub.s32 1, %s17
  %s20 = scalar_select 0, %s19, %s17
  $region1: #{tpu_custom_call.1} parent=0
    #allocation5 [shape = 'u8[16384]{0}', space=vmem, size = 0x4000, scoped, tag = 'input window, operand 0, single buffered']
    #allocation6 [shape = 's32[1]{0}', space=sflag, size = 0x4, scoped, tag = 'scoped memory for tpu_custom_call.1']
    #allocation7 [shape = 's32[1]{0}', space=sflag, size = 0x4, scoped, tag = 'scoped memory for tpu_custom_call.1']
    #allocation8 [shape = 'u8[16384]{0}', space=vmem, size = 0x4000, scoped, tag = 'input window, operand 1, single buffered']
    #allocation9 [shape = 's32[1]{0}', space=sflag, size = 0x4, scoped, tag = 'scoped memory for tpu_custom_call.1']
    #allocation10 [shape = 'u8[16384]{0}', space=vmem, size = 0x4000, scoped, tag = 'input window, operand 2, single buffered']
    #allocation11 [shape = 'u8[16384]{0}', space=vmem, size = 0x4000, scoped, tag = 'input window, operand 3, single buffered']
    #allocation12 [shape = 's32[1]{0}', space=sflag, size = 0x4, scoped, tag = 'scoped memory for tpu_custom_call.1']
    #allocation13 [shape = 'u8[32768]{0}', space=vmem, size = 0x8000, scoped, tag = 'input window, operand 6, single buffered']
    #allocation14 [shape = 'u8[32768]{0}', space=vmem, size = 0x8000, scoped, tag = 'input window, operand 7, single buffered']
    #allocation15 [shape = 's32[1]{0}', space=sflag, size = 0x4, scoped, tag = 'scoped memory for tpu_custom_call.1']
    #allocation16 [shape = 'u8[32768]{0}', space=vmem, size = 0x8000, scoped, tag = 'input window, operand 8, single buffered']
    #allocation17 [shape = 'u8[229376]{0}', space=vmem, size = 0x38000, scoped, tag = 'input window, operand 11, single buffered']
    #allocation18 [shape = 's32[1]{0}', space=sflag, size = 0x4, scoped, tag = 'scoped memory for tpu_custom_call.1']
    #allocation19 [shape = 'u8[32768]{0}', space=vmem, size = 0x8000, scoped, tag = 'input window, operand 14, single buffered']
    #allocation20 [shape = 'u8[1024]{0}', space=vmem, size = 0x400, scoped, tag = 'output window, operand 0, single buffered']
    %21 = vsyncpa [#allocation6], 0
    %22 = vsyncpa [#allocation9], 0
    %23 = vsyncpa [#allocation12], 0
    %24 = vsyncpa [#allocation15], 0
    %25 = vsyncpa [#allocation18], 0
    %26 = vsyncpa [#allocation7], 0
    // Predicated region
    $region2: #{tpu_custom_call.1} parent=1 // pred_check
      _
    $region3: #{tpu_custom_call.1} parent=1 // pred_check_branch
      %28 = sbr.rel (0) target = $region5
    $region4: #{tpu_custom_call.1} parent=1 // pred_region
      %s30 = ssub.s32 512, 512
      %31 = vsyncadd [#allocation6], %s30
      %s32 = sshll.u32 [#allocation5], 4
      %s33 = int_to_ptr.vmem [resolvable:$true] %s32
      %38 = dma.hbm_to_vmem [thread:$0]  %s0, 512, %s33, [#allocation6], 128, 128, 8
    $region5: #{tpu_custom_call.1} parent=1 // pred_fallthru
      _
    // Predicated region
    $region6: #{tpu_custom_call.1} parent=1 // pred_check
      _
    $region7: #{tpu_custom_call.1} parent=1 // pred_check_branch
      %40 = sbr.rel (0) target = $region9
    $region8: #{tpu_custom_call.1} parent=1 // pred_region
      %s42 = ssub.s32 512, 512
      %43 = vsyncadd [#allocation9], %s42
      %s44 = sshll.u32 [#allocation8], 4
      %s45 = int_to_ptr.vmem [resolvable:$true] %s44
      %50 = dma.hbm_to_vmem [thread:$0]  %s1, 512, %s45, [#allocation9], 64, 64, 4
    $region9: #{tpu_custom_call.1} parent=1 // pred_fallthru
      _
    // Predicated region
    $region10: #{tpu_custom_call.1} parent=1 // pred_check
      _
    $region11: #{tpu_custom_call.1} parent=1 // pred_check_branch
      %52 = sbr.rel (0) target = $region13
    $region12: #{tpu_custom_call.1} parent=1 // pred_region
      %s54 = ssub.s32 512, 512
      %55 = vsyncadd [#allocation9], %s54
      %s56 = sshll.u32 [#allocation10], 4
      %s57 = int_to_ptr.vmem [resolvable:$true] %s56
      %62 = dma.hbm_to_vmem [thread:$0]  %s2, 512, %s57, [#allocation9], 64, 64, 4
    $region13: #{tpu_custom_call.1} parent=1 // pred_fallthru
      _
    // Predicated region
    $region14: #{tpu_custom_call.1} parent=1 // pred_check
      _
    $region15: #{tpu_custom_call.1} parent=1 // pred_check_branch
      %64 = sbr.rel (0) target = $region17
    $region16: #{tpu_custom_call.1} parent=1 // pred_region
      %s66 = ssub.s32 512, 512
      %67 = vsyncadd [#allocation12], %s66
      %s68 = sshll.u32 [#allocation11], 4
      %s69 = int_to_ptr.vmem [resolvable:$true] %s68
      %74 = dma.hbm_to_vmem [thread:$0]  %s3, 512, %s69, [#allocation12], 64, 64, 4
    $region17: #{tpu_custom_call.1} parent=1 // pred_fallthru
      _
    // Predicated region
    $region18: #{tpu_custom_call.1} parent=1 // pred_check
      _
    $region19: #{tpu_custom_call.1} parent=1 // pred_check_branch
      %76 = sbr.rel (0) target = $region21
    $region20: #{tpu_custom_call.1} parent=1 // pred_region
      _
    $region21: #{tpu_custom_call.1} parent=1 // pred_fallthru
      _
    // Predicated region
    $region22: #{tpu_custom_call.1} parent=1 // pred_check
      _
    $region23: #{tpu_custom_call.1} parent=1 // pred_check_branch
      %78 = sbr.rel (0) target = $region25
    $region24: #{tpu_custom_call.1} parent=1 // pred_region
      _
    $region25: #{tpu_custom_call.1} parent=1 // pred_fallthru
      _
    // Predicated region
    $region26: #{tpu_custom_call.1} parent=1 // pred_check
      _
    $region27: #{tpu_custom_call.1} parent=1 // pred_check_branch
      %80 = sbr.rel (0) target = $region29
    $region28: #{tpu_custom_call.1} parent=1 // pred_region
      %s82 = ssub.s32 1024, 1024
      %83 = vsyncadd [#allocation12], %s82
      %s84 = sshll.u32 [#allocation13], 4
      %s85 = int_to_ptr.vmem [resolvable:$true] %s84
      %90 = dma.hbm_to_vmem [thread:$0]  %s6, 1024, %s85, [#allocation12], 64, 64, 4
    $region29: #{tpu_custom_call.1} parent=1 // pred_fallthru
      _
    // Predicated region
    $region30: #{tpu_custom_call.1} parent=1 // pred_check
      _
    $region31: #{tpu_custom_call.1} parent=1 // pred_check_branch
      %92 = sbr.rel (0) target = $region33
    $region32: #{tpu_custom_call.1} parent=1 // pred_region
      %s94 = ssub.s32 1024, 1024
      %95 = vsyncadd [#allocation15], %s94
      %s96 = sshll.u32 [#allocation14], 4
      %s97 = int_to_ptr.vmem [resolvable:$true] %s96
      %102 = dma.hbm_to_vmem [thread:$0]  %s7, 1024, %s97, [#allocation15], 64, 64, 4
    $region33: #{tpu_custom_call.1} parent=1 // pred_fallthru
      _
    // Predicated region
    $region34: #{tpu_custom_call.1} parent=1 // pred_check
      _
    $region35: #{tpu_custom_call.1} parent=1 // pred_check_branch
      %104 = sbr.rel (0) target = $region37
    $region36: #{tpu_custom_call.1} parent=1 // pred_region
      %s106 = ssub.s32 1024, 1024
      %107 = vsyncadd [#allocation15], %s106
      %s108 = sshll.u32 [#allocation16], 4
      %s109 = int_to_ptr.vmem [resolvable:$true] %s108
      %114 = dma.hbm_to_vmem [thread:$0]  %s8, 1024, %s109, [#allocation15], 64, 64, 4
    $region37: #{tpu_custom_call.1} parent=1 // pred_fallthru
      _
    // Predicated region
    $region38: #{tpu_custom_call.1} parent=1 // pred_check
      _
    $region39: #{tpu_custom_call.1} parent=1 // pred_check_branch
      %116 = sbr.rel (0) target = $region41
    $region40: #{tpu_custom_call.1} parent=1 // pred_region
      _
    $region41: #{tpu_custom_call.1} parent=1 // pred_fallthru
      _
    // Predicated region
    $region42: #{tpu_custom_call.1} parent=1 // pred_check
      _
    $region43: #{tpu_custom_call.1} parent=1 // pred_check_branch
      %118 = sbr.rel (0) target = $region45
    $region44: #{tpu_custom_call.1} parent=1 // pred_region
      _
    $region45: #{tpu_custom_call.1} parent=1 // pred_fallthru
      _
    // Predicated region
    $region46: #{tpu_custom_call.1} parent=1 // pred_check
      _
    $region47: #{tpu_custom_call.1} parent=1 // pred_check_branch
      %120 = sbr.rel (0) target = $region49
    $region48: #{tpu_custom_call.1} parent=1 // pred_region
      %s122 = ssub.s32 7168, 7168
      %123 = vsyncadd [#allocation18], %s122
      %s124 = sshll.u32 [#allocation17], 4
      %s125 = int_to_ptr.vmem [resolvable:$true] %s124
      %130 = dma.hbm_to_vmem [thread:$0]  %s11, 7168, %s125, [#allocation18], 64, 64, 4
    $region49: #{tpu_custom_call.1} parent=1 // pred_fallthru
      _
    // Predicated region
    $region50: #{tpu_custom_call.1} parent=1 // pred_check
      _
    $region51: #{tpu_custom_call.1} parent=1 // pred_check_branch
      %132 = sbr.rel (0) target = $region53
    $region52: #{tpu_custom_call.1} parent=1 // pred_region
      _
    $region53: #{tpu_custom_call.1} parent=1 // pred_fallthru
      _
    // Predicated region
    $region54: #{tpu_custom_call.1} parent=1 // pred_check
      _
    $region55: #{tpu_custom_call.1} parent=1 // pred_check_branch
      %134 = sbr.rel (0) target = $region57
    $region56: #{tpu_custom_call.1} parent=1 // pred_region
      _
    $region57: #{tpu_custom_call.1} parent=1 // pred_fallthru
      _
    // Predicated region
    $region58: #{tpu_custom_call.1} parent=1 // pred_check
      _
    $region59: #{tpu_custom_call.1} parent=1 // pred_check_branch
      %136 = sbr.rel (0) target = $region61
    $region60: #{tpu_custom_call.1} parent=1 // pred_region
      %s138 = ssub.s32 1024, 1024
      %139 = vsyncadd [#allocation18], %s138
      %s140 = sshll.u32 [#allocation19], 4
      %s141 = int_to_ptr.vmem [resolvable:$true] %s140
      %146 = dma.hbm_to_vmem [thread:$0]  %s14, 1024, %s141, [#allocation18], 64, 64, 4
    $region61: #{tpu_custom_call.1} parent=1 // pred_fallthru
      _
    // Predicated region
    $region62: #{tpu_custom_call.1} parent=1 // pred_check
      _
    $region63: #{tpu_custom_call.1} parent=1 // pred_check_branch
      %148 = sbr.rel (0) target = $region65
    $region64: #{tpu_custom_call.1} parent=1 // pred_region
      _
    $region65: #{tpu_custom_call.1} parent=1 // pred_fallthru
      _
    // Predicated region
    $region66: #{tpu_custom_call.1} parent=1 // pred_check
      _
    $region67: #{tpu_custom_call.1} parent=1 // pred_check_branch
      %150 = sbr.rel (0) target = $region69
    $region68: #{tpu_custom_call.1} parent=1 // pred_region
      %151 = dma.done [#allocation6], 512
    $region69: #{tpu_custom_call.1} parent=1 // pred_fallthru
      _
    // Predicated region
    $region70: #{tpu_custom_call.1} parent=1 // pred_check
      _
    $region71: #{tpu_custom_call.1} parent=1 // pred_check_branch
      %153 = sbr.rel (0) target = $region73
    $region72: #{tpu_custom_call.1} parent=1 // pred_region
      %154 = dma.done [#allocation9], 512
    $region73: #{tpu_custom_call.1} parent=1 // pred_fallthru
      _
    // Predicated region
    $region74: #{tpu_custom_call.1} parent=1 // pred_check
      _
    $region75: #{tpu_custom_call.1} parent=1 // pred_check_branch
      %156 = sbr.rel (0) target = $region77
    $region76: #{tpu_custom_call.1} parent=1 // pred_region
      %157 = dma.done [#allocation9], 512
    $region77: #{tpu_custom_call.1} parent=1 // pred_fallthru
      _
    // Predicated region
    $region78: #{tpu_custom_call.1} parent=1 // pred_check
      _
    $region79: #{tpu_custom_call.1} parent=1 // pred_check_branch
      %159 = sbr.rel (0) target = $region81
    $region80: #{tpu_custom_call.1} parent=1 // pred_region
      %160 = dma.done [#allocation12], 512
    $region81: #{tpu_custom_call.1} parent=1 // pred_fallthru
      _
    // Predicated region
    $region82: #{tpu_custom_call.1} parent=1 // pred_check
      _
    $region83: #{tpu_custom_call.1} parent=1 // pred_check_branch
      %162 = sbr.rel (0) target = $region85
    $region84: #{tpu_custom_call.1} parent=1 // pred_region
      %163 = dma.done [#allocation12], 1024
    $region85: #{tpu_custom_call.1} parent=1 // pred_fallthru
      _
    // Predicated region
    $region86: #{tpu_custom_call.1} parent=1 // pred_check
      _
    $region87: #{tpu_custom_call.1} parent=1 // pred_check_branch
      %165 = sbr.rel (0) target = $region89
    $region88: #{tpu_custom_call.1} parent=1 // pred_region
      %166 = dma.done [#allocation15], 1024
    $region89: #{tpu_custom_call.1} parent=1 // pred_fallthru
      _
    // Predicated region
    $region90: #{tpu_custom_call.1} parent=1 // pred_check
      _
    $region91: #{tpu_custom_call.1} parent=1 // pred_check_branch
      %168 = sbr.rel (0) target = $region93
    $region92: #{tpu_custom_call.1} parent=1 // pred_region
      %169 = dma.done [#allocation15], 1024
    $region93: #{tpu_custom_call.1} parent=1 // pred_fallthru
      _
    // Predicated region
    $region94: #{tpu_custom_call.1} parent=1 // pred_check
      _
    $region95: #{tpu_custom_call.1} parent=1 // pred_check_branch
      %171 = sbr.rel (0) target = $region97
    $region96: #{tpu_custom_call.1} parent=1 // pred_region
      %172 = dma.done [#allocation18], 7168
    $region97: #{tpu_custom_call.1} parent=1 // pred_fallthru
      _
    // Predicated region
    $region98: #{tpu_custom_call.1} parent=1 // pred_check
      _
    $region99: #{tpu_custom_call.1} parent=1 // pred_check_branch
      %174 = sbr.rel (0) target = $region101
    $region100: #{tpu_custom_call.1} parent=1 // pred_region
      %175 = dma.done [#allocation18], 1024
    $region101: #{tpu_custom_call.1} parent=1 // pred_fallthru
      _
    %v177 = vld [vmem:[#allocation5] sm:$0xff]
    %v178 = vld [vmem:[#allocation5 + $0x8] sm:$0xff]
    %v179 = vld [vmem:[#allocation5 + $0x10] sm:$0xff]
    %v180 = vld [vmem:[#allocation5 + $0x18] sm:$0xff]
    %v181 = vlaneseq
    %v182 = vshrl.u32 %v181, 7
    %v183 = vadd.s32 %v182, 8
    %v184 = vadd.s32 %v182, 16
    %v185 = vadd.s32 %v182, 24
    %vm186 = vcmp.lt.s32.totalorder %v182, 0
    %v187 = vsub.s32 0, %v182
    %v188 = vsel %vm186, %v187, %v182
    %v189 = vshrl.u32 %v188, 4
    %v190 = vand.u32 %v188, 15
    %v191 = vsub.s32 0, %v190
    %v192 = vsel %vm186, %v191, %v190
    %vm193 = vcmp.lt.s32.totalorder %v183, 0
    %v194 = vsub.s32 0, %v183
    %v195 = vsel %vm193, %v194, %v183
    %v196 = vshrl.u32 %v195, 4
    %v197 = vand.u32 %v195, 15
    %v198 = vsub.s32 0, %v197
    %v199 = vsel %vm193, %v198, %v197
    %vm200 = vcmp.lt.s32.totalorder %v184, 0
    %v201 = vsub.s32 0, %v184
    %v202 = vsel %vm200, %v201, %v184
    %v203 = vshrl.u32 %v202, 4
    %v204 = vand.u32 %v202, 15
    %v205 = vsub.s32 0, %v204
    %v206 = vsel %vm200, %v205, %v204
    %vm207 = vcmp.lt.s32.totalorder %v185, 0
    %v208 = vsub.s32 0, %v185
    %v209 = vsel %vm207, %v208, %v185
    %v210 = vshrl.u32 %v209, 4
    %v211 = vand.u32 %v209, 15
    %v212 = vsub.s32 0, %v211
    %v213 = vsel %vm207, %v212, %v211
    %vm214 = vcmp.ne.s32.totalorder %v192, 0
    %vm215 = vcmp.ne.s32.totalorder %v199, 0
    %vm216 = vcmp.ne.s32.totalorder %v206, 0
    %vm217 = vcmp.ne.s32.totalorder %v213, 0
    %vm218 = vcmp.lt.s32.totalorder %v192, 0
    %vm219 = vcmp.lt.s32.totalorder %v199, 0
    %vm220 = vcmp.lt.s32.totalorder %v206, 0
    %vm221 = vcmp.lt.s32.totalorder %v213, 0
    %vm222 = vmand %vm218, %vm214
    %vm223 = vmand %vm219, %vm215
    %vm224 = vmand %vm220, %vm216
    %vm225 = vmand %vm221, %vm217
    %v226 = vadd.s32 %v192, 16
    %v227 = vadd.s32 %v199, 16
    %v228 = vadd.s32 %v206, 16
    %v229 = vadd.s32 %v213, 16
    %v230 = vsel %vm222, %v226, %v192
    %v231 = vsel %vm223, %v227, %v199
    %v232 = vsel %vm224, %v228, %v206
    %v233 = vsel %vm225, %v229, %v213
    %vm234 = vcmp.ne.s32.totalorder %v230, 0
    %vm235 = vcmp.ne.s32.totalorder %v231, 0
    %vm236 = vcmp.ne.s32.totalorder %v232, 0
    %vm237 = vcmp.ne.s32.totalorder %v233, 0
    %vm238 = vcmp.ne.s32.totalorder %v230, 15
    %vm239 = vcmp.ne.s32.totalorder %v231, 15
    %vm240 = vcmp.ne.s32.totalorder %v232, 15
    %vm241 = vcmp.ne.s32.totalorder %v233, 15
    %v242 = vrot.slane %v177, 7
    %v243 = vrot.slane %v178, 7
    %v244 = vrot.slane %v179, 7
    %v245 = vrot.slane %v180, 7
    %vm246 = vcmp.lt.s32.totalorder %v182, 1
    %v247 = vsel %vm246, %v244, %v245
    %v248 = vsel %vm246, %v243, %v244
    %v249 = vsel %vm246, %v242, %v243
    %v250 = vsel %vm246, %v245, %v242
    %v251 = vsel %vm234, 1, 0
    %v252 = vsel %vm235, 1, 0
    %v253 = vsel %vm236, 1, 0
    %v254 = vsel %vm237, 1, 0
    %vm255 = vcmp.eq.s32.totalorder %v251, 1
    %vm256 = vcmp.eq.s32.totalorder %v252, 1
    %vm257 = vcmp.eq.s32.totalorder %v253, 1
    %vm258 = vcmp.eq.s32.totalorder %v254, 1
    %v259 = vsel %vm255, %v250, 0.0
    %v260 = vsel %vm256, %v249, 0.0
    %v261 = vsel %vm257, %v248, 0.0
    %v262 = vsel %vm258, %v247, 0.0
    %v263 = vrot.slane %v177, 1
    %v264 = vrot.slane %v178, 1
    %v265 = vrot.slane %v179, 1
    %v266 = vrot.slane %v180, 1
    %vm267 = vcmp.lt.s32.totalorder %v182, 7
    %v268 = vsel %vm267, %v265, %v266
    %v269 = vsel %vm267, %v264, %v265
    %v270 = vsel %vm267, %v263, %v264
    %v271 = vsel %vm267, %v266, %v263
    %v272 = vsel %vm238, 1, 0
    %v273 = vsel %vm239, 1, 0
    %v274 = vsel %vm240, 1, 0
    %v275 = vsel %vm241, 1, 0
    %vm276 = vcmp.eq.s32.totalorder %v272, 1
    %vm277 = vcmp.eq.s32.totalorder %v273, 1
    %vm278 = vcmp.eq.s32.totalorder %v274, 1
    %vm279 = vcmp.eq.s32.totalorder %v275, 1
    %v280 = vsel %vm276, %v270, 0.0
    %v281 = vsel %vm277, %v269, 0.0
    %v282 = vsel %vm278, %v268, 0.0
    %v283 = vsel %vm279, %v271, 0.0
    %v284 = vpack.c.bf16 %v260, %v259
    %v285 = vpack.c.bf16 %v262, %v261
    %v286 = vld [vmem:[#allocation8] sm:$0xf]
    %v287 = vld [vmem:[#allocation8 + $0x4] sm:$0xf]
    %v288 = vld [vmem:[#allocation8 + $0x8] sm:$0xf]
    %v289 = vld [vmem:[#allocation8 + $0xc] sm:$0xf]
    %v290 = vld [vmem:[#allocation8 + $0x10] sm:$0xf]
    %v291 = vld [vmem:[#allocation8 + $0x14] sm:$0xf]
    %v292 = vld [vmem:[#allocation8 + $0x18] sm:$0xf]
    %v293 = vld [vmem:[#allocation8 + $0x1c] sm:$0xf]
    %v294 = vpack.c.bf16 %v178, %v177
    %v295 = vpack.c.bf16 %v180, %v179
    %v296 = vld [vmem:[#allocation10] sm:$0xf]
    %v297 = vld [vmem:[#allocation10 + $0x4] sm:$0xf]
    %v298 = vld [vmem:[#allocation10 + $0x8] sm:$0xf]
    %v299 = vld [vmem:[#allocation10 + $0xc] sm:$0xf]
    %v300 = vld [vmem:[#allocation10 + $0x10] sm:$0xf]
    %v301 = vld [vmem:[#allocation10 + $0x14] sm:$0xf]
    %v302 = vld [vmem:[#allocation10 + $0x18] sm:$0xf]
    %v303 = vld [vmem:[#allocation10 + $0x1c] sm:$0xf]
    %v312 = vunpack.c.l.b16 %v296
    %v313 = vunpack.c.l.b16 %v297
    %v314 = vunpack.c.l.b16 %v298
    %v315 = vunpack.c.l.b16 %v299
    %v316 = vunpack.c.l.b16 %v300
    %v317 = vunpack.c.l.b16 %v301
    %v318 = vunpack.c.l.b16 %v302
    %v319 = vunpack.c.l.b16 %v303
    %v320 = vpack.c.b16 %v313, %v312
    %v321 = vpack.c.b16 %v315, %v314
    %v322 = vpack.c.b16 %v317, %v316
    %v323 = vpack.c.b16 %v319, %v318
    %vm328 = vcmask 523264
    %v330 = vsel %vm328, %v294, 0
    %v333 = vsel %vm328, %v295, 0
    %335 = vmatprep.subr.bf16.mxu0 0
    %336 = vmatpush1.bf16.msra.mxu0 %v320
    %337 = vmatprep.subr.bf16.mxu0 0
    %338 = vmatpush1.bf16.msra.mxu0 %v321
    %339 = vmatprep.subr.bf16.mxu0 0
    %340 = vmatpush1.bf16.msra.mxu0 %v322
    %341 = vmatprep.subr.bf16.mxu0 0
    %342 = vmatpush1.bf16.msra.mxu0 %v323
    %343 = vmatprep.subr.bf16.mxu0 0
    %344 = vmatpush1.bf16.msra.mxu0 0
    %345 = vmatprep.subr.bf16.mxu0 0
    %346 = vmatpush1.bf16.msra.mxu0 0
    %347 = vmatprep.subr.bf16.mxu0 0
    %348 = vmatpush1.bf16.msra.mxu0 0
    %349 = vmatprep.subr.bf16.mxu0 0
    %350 = vmatpush1.bf16.msra.mxu0 0
    %351 = vmatprep.subr.bf16.mxu0 0
    %352 = vmatpush1.bf16.msra.mxu0 0
    %353 = vmatprep.subr.bf16.mxu0 0
    %354 = vmatpush1.bf16.msra.mxu0 0
    %355 = vmatprep.subr.bf16.mxu0 0
    %356 = vmatpush1.bf16.msra.mxu0 0
    %357 = vmatprep.subr.bf16.mxu0 0
    %358 = vmatpush1.bf16.msra.mxu0 0
    %359 = vmatprep.subr.bf16.mxu0 0
    %360 = vmatpush1.bf16.msra.mxu0 0
    %361 = vmatprep.subr.bf16.mxu0 0
    %362 = vmatpush1.bf16.msra.mxu0 0
    %363 = vmatprep.subr.bf16.mxu0 0
    %364 = vmatpush1.bf16.msra.mxu0 0
    %365 = vmatprep.subr.bf16.mxu0 0
    %366 = vmatpush1.bf16.msra.mxu0 0
    %367 = vmatprep.mubr.bf16.mxu0 0
    %368 = vmatmul.mubr.bf16.gmra.mrb[0].mxu0 %v330
    %v369 = vpop.f32.mrb[0].mxu0
    %v370 = vadd.f32 0.0, %v369
    %v371 = vpop.f32.mrb[0].mxu0
    %v372 = vpop.f32.mrb[0].mxu0
    %v373 = vadd.f32 0.0, %v372
    %v374 = vpop.f32.mrb[0].mxu0
    %375 = vmatprep.mubr.bf16.mxu0 0
    %376 = vmatmul.mubr.bf16.gmra.mrb[0].mxu0 %v333
    %v377 = vpop.f32.mrb[0].mxu0
    %v378 = vadd.f32 0.0, %v377
    %v379 = vpop.f32.mrb[0].mxu0
    %v380 = vpop.f32.mrb[0].mxu0
    %v381 = vadd.f32 0.0, %v380
    %v382 = vpop.f32.mrb[0].mxu0
    %383 = vdwg.mxu0
    %v392 = vunpack.c.l.b16 %v286
    %v393 = vunpack.c.l.b16 %v287
    %v394 = vunpack.c.l.b16 %v288
    %v395 = vunpack.c.l.b16 %v289
    %v396 = vunpack.c.l.b16 %v290
    %v397 = vunpack.c.l.b16 %v291
    %v398 = vunpack.c.l.b16 %v292
    %v399 = vunpack.c.l.b16 %v293
    %v400 = vpack.c.b16 %v393, %v392
    %v401 = vpack.c.b16 %v395, %v394
    %v402 = vpack.c.b16 %v397, %v396
    %v403 = vpack.c.b16 %v399, %v398
    %v409 = vsel %vm328, %v284, 0
    %v412 = vsel %vm328, %v285, 0
    %414 = vmatprep.subr.bf16.mxu0 0
    %415 = vmatpush1.bf16.msra.mxu0 %v400
    %416 = vmatprep.subr.bf16.mxu0 0
    %417 = vmatpush1.bf16.msra.mxu0 %v401
    %418 = vmatprep.subr.bf16.mxu0 0
    %419 = vmatpush1.bf16.msra.mxu0 %v402
    %420 = vmatprep.subr.bf16.mxu0 0
    %421 = vmatpush1.bf16.msra.mxu0 %v403
    %422 = vmatprep.subr.bf16.mxu0 0
    %423 = vmatpush1.bf16.msra.mxu0 0
    %424 = vmatprep.subr.bf16.mxu0 0
    %425 = vmatpush1.bf16.msra.mxu0 0
    %426 = vmatprep.subr.bf16.mxu0 0
    %427 = vmatpush1.bf16.msra.mxu0 0
    %428 = vmatprep.subr.bf16.mxu0 0
    %429 = vmatpush1.bf16.msra.mxu0 0
    %430 = vmatprep.subr.bf16.mxu0 0
    %431 = vmatpush1.bf16.msra.mxu0 0
    %432 = vmatprep.subr.bf16.mxu0 0
    %433 = vmatpush1.bf16.msra.mxu0 0
    %434 = vmatprep.subr.bf16.mxu0 0
    %435 = vmatpush1.bf16.msra.mxu0 0
    %436 = vmatprep.subr.bf16.mxu0 0
    %437 = vmatpush1.bf16.msra.mxu0 0
    %438 = vmatprep.subr.bf16.mxu0 0
    %439 = vmatpush1.bf16.msra.mxu0 0
    %440 = vmatprep.subr.bf16.mxu0 0
    %441 = vmatpush1.bf16.msra.mxu0 0
    %442 = vmatprep.subr.bf16.mxu0 0
    %443 = vmatpush1.bf16.msra.mxu0 0
    %444 = vmatprep.subr.bf16.mxu0 0
    %445 = vmatpush1.bf16.msra.mxu0 0
    %446 = vmatprep.mubr.bf16.mxu0 0
    %447 = vmatmul.mubr.bf16.gmra.mrb[0].mxu0 %v409
    %v448 = vpop.f32.mrb[0].mxu0
    %v449 = vadd.f32 %v370, %v448
    %v450 = vpop.f32.mrb[0].mxu0
    %v451 = vpop.f32.mrb[0].mxu0
    %v452 = vadd.f32 %v373, %v451
    %v453 = vpop.f32.mrb[0].mxu0
    %454 = vmatprep.mubr.bf16.mxu0 0
    %455 = vmatmul.mubr.bf16.gmra.mrb[0].mxu0 %v412
    %v456 = vpop.f32.mrb[0].mxu0
    %v457 = vadd.f32 %v378, %v456
    %v458 = vpop.f32.mrb[0].mxu0
    %v459 = vpop.f32.mrb[0].mxu0
    %v460 = vadd.f32 %v381, %v459
    %v461 = vpop.f32.mrb[0].mxu0
    %462 = vdwg.mxu0
    %v463 = vpack.c.bf16 %v281, %v280
    %v464 = vpack.c.bf16 %v283, %v282
    %v465 = vld [vmem:[#allocation11] sm:$0xf]
    %v466 = vld [vmem:[#allocation11 + $0x4] sm:$0xf]
    %v467 = vld [vmem:[#allocation11 + $0x8] sm:$0xf]
    %v468 = vld [vmem:[#allocation11 + $0xc] sm:$0xf]
    %v469 = vld [vmem:[#allocation11 + $0x10] sm:$0xf]
    %v470 = vld [vmem:[#allocation11 + $0x14] sm:$0xf]
    %v471 = vld [vmem:[#allocation11 + $0x18] sm:$0xf]
    %v472 = vld [vmem:[#allocation11 + $0x1c] sm:$0xf]
    %v481 = vunpack.c.l.b16 %v465
    %v482 = vunpack.c.l.b16 %v466
    %v483 = vunpack.c.l.b16 %v467
    %v484 = vunpack.c.l.b16 %v468
    %v485 = vunpack.c.l.b16 %v469
    %v486 = vunpack.c.l.b16 %v470
    %v487 = vunpack.c.l.b16 %v471
    %v488 = vunpack.c.l.b16 %v472
    %v489 = vpack.c.b16 %v482, %v481
    %v490 = vpack.c.b16 %v484, %v483
    %v491 = vpack.c.b16 %v486, %v485
    %v492 = vpack.c.b16 %v488, %v487
    %v498 = vsel %vm328, %v463, 0
    %v501 = vsel %vm328, %v464, 0
    %503 = vmatprep.subr.bf16.mxu0 0
    %504 = vmatpush1.bf16.msra.mxu0 %v489
    %505 = vmatprep.subr.bf16.mxu0 0
    %506 = vmatpush1.bf16.msra.mxu0 %v490
    %507 = vmatprep.subr.bf16.mxu0 0
    %508 = vmatpush1.bf16.msra.mxu0 %v491
    %509 = vmatprep.subr.bf16.mxu0 0
    %510 = vmatpush1.bf16.msra.mxu0 %v492
    %511 = vmatprep.subr.bf16.mxu0 0
    %512 = vmatpush1.bf16.msra.mxu0 0
    %513 = vmatprep.subr.bf16.mxu0 0
    %514 = vmatpush1.bf16.msra.mxu0 0
    %515 = vmatprep.subr.bf16.mxu0 0
    %516 = vmatpush1.bf16.msra.mxu0 0
    %517 = vmatprep.subr.bf16.mxu0 0
    %518 = vmatpush1.bf16.msra.mxu0 0
    %519 = vmatprep.subr.bf16.mxu0 0
    %520 = vmatpush1.bf16.msra.mxu0 0
    %521 = vmatprep.subr.bf16.mxu0 0
    %522 = vmatpush1.bf16.msra.mxu0 0
    %523 = vmatprep.subr.bf16.mxu0 0
    %524 = vmatpush1.bf16.msra.mxu0 0
    %525 = vmatprep.subr.bf16.mxu0 0
    %526 = vmatpush1.bf16.msra.mxu0 0
    %527 = vmatprep.subr.bf16.mxu0 0
    %528 = vmatpush1.bf16.msra.mxu0 0
    %529 = vmatprep.subr.bf16.mxu0 0
    %530 = vmatpush1.bf16.msra.mxu0 0
    %531 = vmatprep.subr.bf16.mxu0 0
    %532 = vmatpush1.bf16.msra.mxu0 0
    %533 = vmatprep.subr.bf16.mxu0 0
    %534 = vmatpush1.bf16.msra.mxu0 0
    %535 = vmatprep.mubr.bf16.mxu0 0
    %536 = vmatmul.mubr.bf16.gmra.mrb[0].mxu0 %v498
    %v537 = vpop.f32.mrb[0].mxu0
    %v538 = vadd.f32 0.0, %v537
    %v539 = vpop.f32.mrb[0].mxu0
    %v540 = vpop.f32.mrb[0].mxu0
    %v541 = vadd.f32 0.0, %v540
    %v542 = vpop.f32.mrb[0].mxu0
    %543 = vmatprep.mubr.bf16.mxu0 0
    %544 = vmatmul.mubr.bf16.gmra.mrb[0].mxu0 %v501
    %v545 = vpop.f32.mrb[0].mxu0
    %v546 = vadd.f32 0.0, %v545
    %v547 = vpop.f32.mrb[0].mxu0
    %v548 = vpop.f32.mrb[0].mxu0
    %v549 = vadd.f32 0.0, %v548
    %v550 = vpop.f32.mrb[0].mxu0
    %551 = vdwg.mxu0
    %v552 = vadd.f32 %v449, %v538
    %v553 = vadd.f32 %v452, %v541
    %v554 = vadd.f32 %v457, %v546
    %v555 = vadd.f32 %v460, %v549
    %v556 = vld [vmem:[%s4] sm:$0x1]
    %v558 = vlaneseq
    %v559 = vshrl.u32 %v558, 7
    %v560 = vsub.s32 0, %v559
    %v561 = vrot.slane %v556, %v560
    %v563 = vmul.f32 %v552, %v561
    %v564 = vmul.f32 %v553, %v561
    %v565 = vmul.f32 %v554, %v561
    %v566 = vmul.f32 %v555, %v561
    %v567 = vld [vmem:[%s5] sm:$0x1]
    %v569 = vlaneseq
    %v570 = vshrl.u32 %v569, 7
    %v571 = vsub.s32 0, %v570
    %v572 = vrot.slane %v567, %v571
    %v574 = vadd.f32 %v563, %v572
    %v575 = vadd.f32 %v564, %v572
    %v576 = vadd.f32 %v565, %v572
    %v577 = vadd.f32 %v566, %v572
    %v578 = vmax.f32 %v574, 0.0
    %v579 = vmax.f32 %v575, 0.0
    %v580 = vmax.f32 %v576, 0.0
    %v581 = vmax.f32 %v577, 0.0
    %582 = vst [vmem:[#allocation2] sm:$0xff] %v578
    %583 = vst [vmem:[#allocation2 + $0x8] sm:$0xff] %v579
    %584 = vst [vmem:[#allocation2 + $0x10] sm:$0xff] %v580
    %585 = vst [vmem:[#allocation2 + $0x18] sm:$0xff] %v581
    %v586 = vld [vmem:[#allocation2] ss:$2 sm:$0xff]
    %s587 = scalar_lea.vmem [#allocation2], 16
    %v588 = vld [vmem:[%s587] ss:$2 sm:$0xff]
    %s589 = scalar_lea.vmem [#allocation2], 1
    %v590 = vld [vmem:[%s589] ss:$2 sm:$0xff]
    %s591 = scalar_lea.vmem [#allocation2], 17
    %v592 = vld [vmem:[%s591] ss:$2 sm:$0xff]
    %v593 = vmax.f32 %v586, %v590
    %v594 = vmax.f32 %v588, %v592
    %595 = vrot.lane.b32.xlu0 %v593, 127
    %v596 = vpop.permute.xlu0 %595
    %597 = vrot.lane.b32.xlu0 %v594, 127
    %v598 = vpop.permute.xlu0 %597
    %v599 = vmax.f32 %v593, %v596
    %v600 = vmax.f32 %v594, %v598
    %vm601 = vcmp.lt.s32.totalorder %v182, 0
    %v602 = vsub.s32 0, %v182
    %v603 = vsel %vm601, %v602, %v182
    %v604 = vshrl.u32 %v603, 3
    %v605 = vand.u32 %v603, 7
    %v606 = vsub.s32 0, %v605
    %v607 = vsel %vm601, %v606, %v605
    %vm608 = vcmp.lt.s32.totalorder %v183, 0
    %v609 = vsub.s32 0, %v183
    %v610 = vsel %vm608, %v609, %v183
    %v611 = vshrl.u32 %v610, 3
    %v612 = vand.u32 %v610, 7
    %v613 = vsub.s32 0, %v612
    %v614 = vsel %vm608, %v613, %v612
    %vm615 = vcmp.ne.s32.totalorder %v607, 0
    %vm616 = vcmp.ne.s32.totalorder %v614, 0
    %vm617 = vcmp.lt.s32.totalorder %v607, 0
    %vm618 = vcmp.lt.s32.totalorder %v614, 0
    %vm619 = vmand %vm617, %vm615
    %vm620 = vmand %vm618, %vm616
    %v621 = vadd.s32 %v607, 8
    %v622 = vadd.s32 %v614, 8
    %v623 = vsel %vm619, %v621, %v607
    %v624 = vsel %vm620, %v622, %v614
    %vm625 = vcmp.ne.s32.totalorder %v623, 0
    %vm626 = vcmp.ne.s32.totalorder %v624, 0
    %vm627 = vcmp.ne.s32.totalorder %v623, 7
    %vm628 = vcmp.ne.s32.totalorder %v624, 7
    %v629 = vrot.slane %v599, 7
    %v630 = vrot.slane %v600, 7
    %v631 = vsel %vm246, %v629, %v630
    %v632 = vsel %vm246, %v630, %v629
    %v633 = vsel %vm625, 1, 0
    %v634 = vsel %vm626, 1, 0
    %vm635 = vcmp.eq.s32.totalorder %v633, 1
    %vm636 = vcmp.eq.s32.totalorder %v634, 1
    %v637 = vsel %vm635, %v632, 0.0
    %v638 = vsel %vm636, %v631, 0.0
    %v639 = vrot.slane %v599, 1
    %v640 = vrot.slane %v600, 1
    %v641 = vsel %vm267, %v639, %v640
    %v642 = vsel %vm267, %v640, %v639
    %v643 = vsel %vm627, 1, 0
    %v644 = vsel %vm628, 1, 0
    %vm645 = vcmp.eq.s32.totalorder %v643, 1
    %vm646 = vcmp.eq.s32.totalorder %v644, 1
    %v647 = vsel %vm645, %v641, 0.0
    %v648 = vsel %vm646, %v642, 0.0
    %v649 = vpack.c.bf16 %v638, %v637
    %v650 = vld [vmem:[#allocation13] sm:$0xf]
    %v651 = vld [vmem:[#allocation13 + $0x4] sm:$0xf]
    %v652 = vld [vmem:[#allocation13 + $0x8] sm:$0xf]
    %v653 = vld [vmem:[#allocation13 + $0xc] sm:$0xf]
    %v654 = vld [vmem:[#allocation13 + $0x10] sm:$0xf]
    %v655 = vld [vmem:[#allocation13 + $0x14] sm:$0xf]
    %v656 = vld [vmem:[#allocation13 + $0x18] sm:$0xf]
    %v657 = vld [vmem:[#allocation13 + $0x1c] sm:$0xf]
    %v658 = vld [vmem:[#allocation13 + $0x20] sm:$0xf]
    %v659 = vld [vmem:[#allocation13 + $0x24] sm:$0xf]
    %v660 = vld [vmem:[#allocation13 + $0x28] sm:$0xf]
    %v661 = vld [vmem:[#allocation13 + $0x2c] sm:$0xf]
    %v662 = vld [vmem:[#allocation13 + $0x30] sm:$0xf]
    %v663 = vld [vmem:[#allocation13 + $0x34] sm:$0xf]
    %v664 = vld [vmem:[#allocation13 + $0x38] sm:$0xf]
    %v665 = vld [vmem:[#allocation13 + $0x3c] sm:$0xf]
    %v666 = vpack.c.bf16 %v600, %v599
    %v667 = vld [vmem:[#allocation14] sm:$0xf]
    %v668 = vld [vmem:[#allocation14 + $0x4] sm:$0xf]
    %v669 = vld [vmem:[#allocation14 + $0x8] sm:$0xf]
    %v670 = vld [vmem:[#allocation14 + $0xc] sm:$0xf]
    %v671 = vld [vmem:[#allocation14 + $0x10] sm:$0xf]
    %v672 = vld [vmem:[#allocation14 + $0x14] sm:$0xf]
    %v673 = vld [vmem:[#allocation14 + $0x18] sm:$0xf]
    %v674 = vld [vmem:[#allocation14 + $0x1c] sm:$0xf]
    %v675 = vld [vmem:[#allocation14 + $0x20] sm:$0xf]
    %v676 = vld [vmem:[#allocation14 + $0x24] sm:$0xf]
    %v677 = vld [vmem:[#allocation14 + $0x28] sm:$0xf]
    %v678 = vld [vmem:[#allocation14 + $0x2c] sm:$0xf]
    %v679 = vld [vmem:[#allocation14 + $0x30] sm:$0xf]
    %v680 = vld [vmem:[#allocation14 + $0x34] sm:$0xf]
    %v681 = vld [vmem:[#allocation14 + $0x38] sm:$0xf]
    %v682 = vld [vmem:[#allocation14 + $0x3c] sm:$0xf]
    %v699 = vunpack.c.l.b16 %v667
    %v700 = vunpack.c.l.b16 %v668
    %v701 = vunpack.c.l.b16 %v669
    %v702 = vunpack.c.l.b16 %v670
    %v703 = vunpack.c.l.b16 %v671
    %v704 = vunpack.c.l.b16 %v672
    %v705 = vunpack.c.l.b16 %v673
    %v706 = vunpack.c.l.b16 %v674
    %v707 = vunpack.c.l.b16 %v675
    %v708 = vunpack.c.l.b16 %v676
    %v709 = vunpack.c.l.b16 %v677
    %v710 = vunpack.c.l.b16 %v678
    %v711 = vunpack.c.l.b16 %v679
    %v712 = vunpack.c.l.b16 %v680
    %v713 = vunpack.c.l.b16 %v681
    %v714 = vunpack.c.l.b16 %v682
    %v715 = vpack.c.b16 %v700, %v699
    %v716 = vpack.c.b16 %v702, %v701
    %v717 = vpack.c.b16 %v704, %v703
    %v718 = vpack.c.b16 %v706, %v705
    %v719 = vpack.c.b16 %v708, %v707
    %v720 = vpack.c.b16 %v710, %v709
    %v721 = vpack.c.b16 %v712, %v711
    %v722 = vpack.c.b16 %v714, %v713
    %731 = vmatprep.subr.bf16.mxu0 0
    %732 = vmatpush1.bf16.msra.mxu0 %v715
    %733 = vmatprep.subr.bf16.mxu0 0
    %734 = vmatpush1.bf16.msra.mxu0 %v716
    %735 = vmatprep.subr.bf16.mxu0 0
    %736 = vmatpush1.bf16.msra.mxu0 %v717
    %737 = vmatprep.subr.bf16.mxu0 0
    %738 = vmatpush1.bf16.msra.mxu0 %v718
    %739 = vmatprep.subr.bf16.mxu0 0
    %740 = vmatpush1.bf16.msra.mxu0 %v719
    %741 = vmatprep.subr.bf16.mxu0 0
    %742 = vmatpush1.bf16.msra.mxu0 %v720
    %743 = vmatprep.subr.bf16.mxu0 0
    %744 = vmatpush1.bf16.msra.mxu0 %v721
    %745 = vmatprep.subr.bf16.mxu0 0
    %746 = vmatpush1.bf16.msra.mxu0 %v722
    %747 = vmatprep.subr.bf16.mxu0 0
    %748 = vmatpush1.bf16.msra.mxu0 0
    %749 = vmatprep.subr.bf16.mxu0 0
    %750 = vmatpush1.bf16.msra.mxu0 0
    %751 = vmatprep.subr.bf16.mxu0 0
    %752 = vmatpush1.bf16.msra.mxu0 0
    %753 = vmatprep.subr.bf16.mxu0 0
    %754 = vmatpush1.bf16.msra.mxu0 0
    %755 = vmatprep.subr.bf16.mxu0 0
    %756 = vmatpush1.bf16.msra.mxu0 0
    %757 = vmatprep.subr.bf16.mxu0 0
    %758 = vmatpush1.bf16.msra.mxu0 0
    %759 = vmatprep.subr.bf16.mxu0 0
    %760 = vmatpush1.bf16.msra.mxu0 0
    %761 = vmatprep.subr.bf16.mxu0 0
    %762 = vmatpush1.bf16.msra.mxu0 0
    %763 = vmatprep.mubr.bf16.mxu0 0
    %764 = vmatmul.mubr.bf16.gmra.mrb[0].mxu0 %v666
    %v765 = vpop.f32.mrb[0].mxu0
    %v766 = vadd.f32 0.0, %v765
    %v767 = vpop.f32.mrb[0].mxu0
    %v768 = vpop.f32.mrb[0].mxu0
    %v769 = vadd.f32 0.0, %v768
    %v770 = vpop.f32.mrb[0].mxu0
    %771 = vdwg.mxu0
    %v788 = vunpack.c.l.b16 %v650
    %v789 = vunpack.c.l.b16 %v651
    %v790 = vunpack.c.l.b16 %v652
    %v791 = vunpack.c.l.b16 %v653
    %v792 = vunpack.c.l.b16 %v654
    %v793 = vunpack.c.l.b16 %v655
    %v794 = vunpack.c.l.b16 %v656
    %v795 = vunpack.c.l.b16 %v657
    %v796 = vunpack.c.l.b16 %v658
    %v797 = vunpack.c.l.b16 %v659
    %v798 = vunpack.c.l.b16 %v660
    %v799 = vunpack.c.l.b16 %v661
    %v800 = vunpack.c.l.b16 %v662
    %v801 = vunpack.c.l.b16 %v663
    %v802 = vunpack.c.l.b16 %v664
    %v803 = vunpack.c.l.b16 %v665
    %v804 = vpack.c.b16 %v789, %v788
    %v805 = vpack.c.b16 %v791, %v790
    %v806 = vpack.c.b16 %v793, %v792
    %v807 = vpack.c.b16 %v795, %v794
    %v808 = vpack.c.b16 %v797, %v796
    %v809 = vpack.c.b16 %v799, %v798
    %v810 = vpack.c.b16 %v801, %v800
    %v811 = vpack.c.b16 %v803, %v802
    %820 = vmatprep.subr.bf16.mxu0 0
    %821 = vmatpush1.bf16.msra.mxu0 %v804
    %822 = vmatprep.subr.bf16.mxu0 0
    %823 = vmatpush1.bf16.msra.mxu0 %v805
    %824 = vmatprep.subr.bf16.mxu0 0
    %825 = vmatpush1.bf16.msra.mxu0 %v806
    %826 = vmatprep.subr.bf16.mxu0 0
    %827 = vmatpush1.bf16.msra.mxu0 %v807
    %828 = vmatprep.subr.bf16.mxu0 0
    %829 = vmatpush1.bf16.msra.mxu0 %v808
    %830 = vmatprep.subr.bf16.mxu0 0
    %831 = vmatpush1.bf16.msra.mxu0 %v809
    %832 = vmatprep.subr.bf16.mxu0 0
    %833 = vmatpush1.bf16.msra.mxu0 %v810
    %834 = vmatprep.subr.bf16.mxu0 0
    %835 = vmatpush1.bf16.msra.mxu0 %v811
    %836 = vmatprep.subr.bf16.mxu0 0
    %837 = vmatpush1.bf16.msra.mxu0 0
    %838 = vmatprep.subr.bf16.mxu0 0
    %839 = vmatpush1.bf16.msra.mxu0 0
    %840 = vmatprep.subr.bf16.mxu0 0
    %841 = vmatpush1.bf16.msra.mxu0 0
    %842 = vmatprep.subr.bf16.mxu0 0
    %843 = vmatpush1.bf16.msra.mxu0 0
    %844 = vmatprep.subr.bf16.mxu0 0
    %845 = vmatpush1.bf16.msra.mxu0 0
    %846 = vmatprep.subr.bf16.mxu0 0
    %847 = vmatpush1.bf16.msra.mxu0 0
    %848 = vmatprep.subr.bf16.mxu0 0
    %849 = vmatpush1.bf16.msra.mxu0 0
    %850 = vmatprep.subr.bf16.mxu0 0
    %851 = vmatpush1.bf16.msra.mxu0 0
    %852 = vmatprep.mubr.bf16.mxu0 0
    %853 = vmatmul.mubr.bf16.gmra.mrb[0].mxu0 %v649
    %v854 = vpop.f32.mrb[0].mxu0
    %v855 = vadd.f32 %v766, %v854
    %v856 = vpop.f32.mrb[0].mxu0
    %v857 = vpop.f32.mrb[0].mxu0
    %v858 = vadd.f32 %v769, %v857
    %v859 = vpop.f32.mrb[0].mxu0
    %860 = vdwg.mxu0
    %v861 = vpack.c.bf16 %v648, %v647
    %v862 = vld [vmem:[#allocation16] sm:$0xf]
    %v863 = vld [vmem:[#allocation16 + $0x4] sm:$0xf]
    %v864 = vld [vmem:[#allocation16 + $0x8] sm:$0xf]
    %v865 = vld [vmem:[#allocation16 + $0xc] sm:$0xf]
    %v866 = vld [vmem:[#allocation16 + $0x10] sm:$0xf]
    %v867 = vld [vmem:[#allocation16 + $0x14] sm:$0xf]
    %v868 = vld [vmem:[#allocation16 + $0x18] sm:$0xf]
    %v869 = vld [vmem:[#allocation16 + $0x1c] sm:$0xf]
    %v870 = vld [vmem:[#allocation16 + $0x20] sm:$0xf]
    %v871 = vld [vmem:[#allocation16 + $0x24] sm:$0xf]
    %v872 = vld [vmem:[#allocation16 + $0x28] sm:$0xf]
    %v873 = vld [vmem:[#allocation16 + $0x2c] sm:$0xf]
    %v874 = vld [vmem:[#allocation16 + $0x30] sm:$0xf]
    %v875 = vld [vmem:[#allocation16 + $0x34] sm:$0xf]
    %v876 = vld [vmem:[#allocation16 + $0x38] sm:$0xf]
    %v877 = vld [vmem:[#allocation16 + $0x3c] sm:$0xf]
    %v894 = vunpack.c.l.b16 %v862
    %v895 = vunpack.c.l.b16 %v863
    %v896 = vunpack.c.l.b16 %v864
    %v897 = vunpack.c.l.b16 %v865
    %v898 = vunpack.c.l.b16 %v866
    %v899 = vunpack.c.l.b16 %v867
    %v900 = vunpack.c.l.b16 %v868
    %v901 = vunpack.c.l.b16 %v869
    %v902 = vunpack.c.l.b16 %v870
    %v903 = vunpack.c.l.b16 %v871
    %v904 = vunpack.c.l.b16 %v872
    %v905 = vunpack.c.l.b16 %v873
    %v906 = vunpack.c.l.b16 %v874
    %v907 = vunpack.c.l.b16 %v875
    %v908 = vunpack.c.l.b16 %v876
    %v909 = vunpack.c.l.b16 %v877
    %v910 = vpack.c.b16 %v895, %v894
    %v911 = vpack.c.b16 %v897, %v896
    %v912 = vpack.c.b16 %v899, %v898
    %v913 = vpack.c.b16 %v901, %v900
    %v914 = vpack.c.b16 %v903, %v902
    %v915 = vpack.c.b16 %v905, %v904
    %v916 = vpack.c.b16 %v907, %v906
    %v917 = vpack.c.b16 %v909, %v908
    %926 = vmatprep.subr.bf16.mxu0 0
    %927 = vmatpush1.bf16.msra.mxu0 %v910
    %928 = vmatprep.subr.bf16.mxu0 0
    %929 = vmatpush1.bf16.msra.mxu0 %v911
    %930 = vmatprep.subr.bf16.mxu0 0
    %931 = vmatpush1.bf16.msra.mxu0 %v912
    %932 = vmatprep.subr.bf16.mxu0 0
    %933 = vmatpush1.bf16.msra.mxu0 %v913
    %934 = vmatprep.subr.bf16.mxu0 0
    %935 = vmatpush1.bf16.msra.mxu0 %v914
    %936 = vmatprep.subr.bf16.mxu0 0
    %937 = vmatpush1.bf16.msra.mxu0 %v915
    %938 = vmatprep.subr.bf16.mxu0 0
    %939 = vmatpush1.bf16.msra.mxu0 %v916
    %940 = vmatprep.subr.bf16.mxu0 0
    %941 = vmatpush1.bf16.msra.mxu0 %v917
    %942 = vmatprep.subr.bf16.mxu0 0
    %943 = vmatpush1.bf16.msra.mxu0 0
    %944 = vmatprep.subr.bf16.mxu0 0
    %945 = vmatpush1.bf16.msra.mxu0 0
    %946 = vmatprep.subr.bf16.mxu0 0
    %947 = vmatpush1.bf16.msra.mxu0 0
    %948 = vmatprep.subr.bf16.mxu0 0
    %949 = vmatpush1.bf16.msra.mxu0 0
    %950 = vmatprep.subr.bf16.mxu0 0
    %951 = vmatpush1.bf16.msra.mxu0 0
    %952 = vmatprep.subr.bf16.mxu0 0
    %953 = vmatpush1.bf16.msra.mxu0 0
    %954 = vmatprep.subr.bf16.mxu0 0
    %955 = vmatpush1.bf16.msra.mxu0 0
    %956 = vmatprep.subr.bf16.mxu0 0
    %957 = vmatpush1.bf16.msra.mxu0 0
    %958 = vmatprep.mubr.bf16.mxu0 0
    %959 = vmatmul.mubr.bf16.gmra.mrb[0].mxu0 %v861
    %v960 = vpop.f32.mrb[0].mxu0
    %v961 = vadd.f32 0.0, %v960
    %v962 = vpop.f32.mrb[0].mxu0
    %v963 = vpop.f32.mrb[0].mxu0
    %v964 = vadd.f32 0.0, %v963
    %v965 = vpop.f32.mrb[0].mxu0
    %966 = vdwg.mxu0
    %v967 = vadd.f32 %v855, %v961
    %v968 = vadd.f32 %v858, %v964
    %v969 = vld [vmem:[%s9] sm:$0x1]
    %v971 = vlaneseq
    %v972 = vshrl.u32 %v971, 7
    %v973 = vsub.s32 0, %v972
    %v974 = vrot.slane %v969, %v973
    %v976 = vmul.f32 %v967, %v974
    %v977 = vmul.f32 %v968, %v974
    %v978 = vld [vmem:[%s10] sm:$0x1]
    %v980 = vlaneseq
    %v981 = vshrl.u32 %v980, 7
    %v982 = vsub.s32 0, %v981
    %v983 = vrot.slane %v978, %v982
    %v985 = vadd.f32 %v976, %v983
    %v986 = vadd.f32 %v977, %v983
    %v987 = vmax.f32 %v985, 0.0
    %v988 = vmax.f32 %v986, 0.0
    %989 = vst [vmem:[#allocation3] sm:$0xff] %v987
    %990 = vst [vmem:[#allocation3 + $0x8] sm:$0xff] %v988
    %v991 = vld [vmem:[#allocation3] ss:$2 sm:$0xff]
    %s992 = scalar_lea.vmem [#allocation3], 1
    %v993 = vld [vmem:[%s992] ss:$2 sm:$0xff]
    %v994 = vmax.f32 %v991, %v993
    %995 = vst [vmem:[#allocation4] sm:$0xff] %v994
    %v996 = vld [vmem:[#allocation4] ss:$4 sm:$0x3]
    %997 = vrot.lane.b32.xlu0 %v996, 127
    %v998 = vpop.permute.xlu0 %997
    %v999 = vmax.f32 %v996, %v998
    %s1000 = scalar_lea.vmem [#allocation4], 1
    %v1001 = vld [vmem:[%s1000] ss:$4 sm:$0x3]
    %1002 = vrot.lane.b32.xlu0 %v1001, 127
    %v1003 = vpop.permute.xlu0 %1002
    %v1004 = vmax.f32 %v1001, %v1003
    %s1005 = scalar_lea.vmem [#allocation4], 2
    %v1006 = vld [vmem:[%s1005] ss:$4 sm:$0x3]
    %1007 = vrot.lane.b32.xlu0 %v1006, 127
    %v1008 = vpop.permute.xlu0 %1007
    %v1009 = vmax.f32 %v1006, %v1008
    %s1010 = scalar_lea.vmem [#allocation4], 3
    %v1011 = vld [vmem:[%s1010] ss:$4 sm:$0x3]
    %1012 = vrot.lane.b32.xlu0 %v1011, 127
    %v1013 = vpop.permute.xlu0 %1012
    %v1014 = vmax.f32 %v1011, %v1013
    %v1015 = vmax.f32 %v996, %v1001
    %1016 = vrot.lane.b32.xlu0 %v1015, 127
    %v1017 = vpop.permute.xlu0 %1016
    %v1018 = vmax.f32 %v1015, %v1017
    %1019 = vrot.lane.b32.xlu0 %v1018, 126
    %v1020 = vpop.permute.xlu0 %1019
    %v1021 = vmax.f32 %v1018, %v1020
    %v1022 = vmax.f32 %v1006, %v1011
    %1023 = vrot.lane.b32.xlu0 %v1022, 127
    %v1024 = vpop.permute.xlu0 %1023
    %v1025 = vmax.f32 %v1022, %v1024
    %1026 = vrot.lane.b32.xlu0 %v1025, 126
    %v1027 = vpop.permute.xlu0 %1026
    %v1028 = vmax.f32 %v1025, %v1027
    %v1029 = vmax.f32 %v1015, %v1006
    %v1030 = vmax.f32 %v1029, %v1011
    %1031 = vrot.lane.b32.xlu0 %v1030, 127
    %v1032 = vpop.permute.xlu0 %1031
    %v1033 = vmax.f32 %v1030, %v1032
    %1034 = vrot.lane.b32.xlu0 %v1033, 126
    %v1035 = vpop.permute.xlu0 %1034
    %v1036 = vmax.f32 %v1033, %v1035
    %1037 = vrot.lane.b32.xlu0 %v1036, 124
    %v1038 = vpop.permute.xlu0 %1037
    %v1039 = vmax.f32 %v1036, %v1038
    %v1040 = vpack.c.bf16 %v999, %v999
    %v1041 = vld [vmem:[#allocation17] sm:$0xf]
    %v1042 = vld [vmem:[#allocation17 + $0x4] sm:$0xf]
    %v1043 = vld [vmem:[#allocation17 + $0x8] sm:$0xf]
    %v1044 = vld [vmem:[#allocation17 + $0xc] sm:$0xf]
    %v1045 = vld [vmem:[#allocation17 + $0x10] sm:$0xf]
    %v1046 = vld [vmem:[#allocation17 + $0x14] sm:$0xf]
    %v1047 = vld [vmem:[#allocation17 + $0x18] sm:$0xf]
    %v1048 = vld [vmem:[#allocation17 + $0x1c] sm:$0xf]
    %v1049 = vld [vmem:[#allocation17 + $0x20] sm:$0xf]
    %v1050 = vld [vmem:[#allocation17 + $0x24] sm:$0xf]
    %v1051 = vld [vmem:[#allocation17 + $0x28] sm:$0xf]
    %v1052 = vld [vmem:[#allocation17 + $0x2c] sm:$0xf]
    %v1053 = vld [vmem:[#allocation17 + $0x30] sm:$0xf]
    %v1054 = vld [vmem:[#allocation17 + $0x34] sm:$0xf]
    %v1055 = vld [vmem:[#allocation17 + $0x38] sm:$0xf]
    %v1056 = vld [vmem:[#allocation17 + $0x3c] sm:$0xf]
    %v1057 = vpack.c.bf16 %v1004, %v1004
    %v1058 = vld [vmem:[#allocation17 + $0x40] sm:$0xf]
    %v1059 = vld [vmem:[#allocation17 + $0x44] sm:$0xf]
    %v1060 = vld [vmem:[#allocation17 + $0x48] sm:$0xf]
    %v1061 = vld [vmem:[#allocation17 + $0x4c] sm:$0xf]
    %v1062 = vld [vmem:[#allocation17 + $0x50] sm:$0xf]
    %v1063 = vld [vmem:[#allocation17 + $0x54] sm:$0xf]
    %v1064 = vld [vmem:[#allocation17 + $0x58] sm:$0xf]
    %v1065 = vld [vmem:[#allocation17 + $0x5c] sm:$0xf]
    %v1066 = vld [vmem:[#allocation17 + $0x60] sm:$0xf]
    %v1067 = vld [vmem:[#allocation17 + $0x64] sm:$0xf]
    %v1068 = vld [vmem:[#allocation17 + $0x68] sm:$0xf]
    %v1069 = vld [vmem:[#allocation17 + $0x6c] sm:$0xf]
    %v1070 = vld [vmem:[#allocation17 + $0x70] sm:$0xf]
    %v1071 = vld [vmem:[#allocation17 + $0x74] sm:$0xf]
    %v1072 = vld [vmem:[#allocation17 + $0x78] sm:$0xf]
    %v1073 = vld [vmem:[#allocation17 + $0x7c] sm:$0xf]
    %v1090 = vunpack.c.l.b16 %v1058
    %v1091 = vunpack.c.l.b16 %v1059
    %v1092 = vunpack.c.l.b16 %v1060
    %v1093 = vunpack.c.l.b16 %v1061
    %v1094 = vunpack.c.l.b16 %v1062
    %v1095 = vunpack.c.l.b16 %v1063
    %v1096 = vunpack.c.l.b16 %v1064
    %v1097 = vunpack.c.l.b16 %v1065
    %v1098 = vunpack.c.l.b16 %v1066
    %v1099 = vunpack.c.l.b16 %v1067
    %v1100 = vunpack.c.l.b16 %v1068
    %v1101 = vunpack.c.l.b16 %v1069
    %v1102 = vunpack.c.l.b16 %v1070
    %v1103 = vunpack.c.l.b16 %v1071
    %v1104 = vunpack.c.l.b16 %v1072
    %v1105 = vunpack.c.l.b16 %v1073
    %v1106 = vpack.c.b16 %v1091, %v1090
    %v1107 = vpack.c.b16 %v1093, %v1092
    %v1108 = vpack.c.b16 %v1095, %v1094
    %v1109 = vpack.c.b16 %v1097, %v1096
    %v1110 = vpack.c.b16 %v1099, %v1098
    %v1111 = vpack.c.b16 %v1101, %v1100
    %v1112 = vpack.c.b16 %v1103, %v1102
    %v1113 = vpack.c.b16 %v1105, %v1104
    %1122 = vmatprep.subr.bf16.mxu0 0
    %1123 = vmatpush1.bf16.msra.mxu0 %v1106
    %1124 = vmatprep.subr.bf16.mxu0 0
    %1125 = vmatpush1.bf16.msra.mxu0 %v1107
    %1126 = vmatprep.subr.bf16.mxu0 0
    %1127 = vmatpush1.bf16.msra.mxu0 %v1108
    %1128 = vmatprep.subr.bf16.mxu0 0
    %1129 = vmatpush1.bf16.msra.mxu0 %v1109
    %1130 = vmatprep.subr.bf16.mxu0 0
    %1131 = vmatpush1.bf16.msra.mxu0 %v1110
    %1132 = vmatprep.subr.bf16.mxu0 0
    %1133 = vmatpush1.bf16.msra.mxu0 %v1111
    %1134 = vmatprep.subr.bf16.mxu0 0
    %1135 = vmatpush1.bf16.msra.mxu0 %v1112
    %1136 = vmatprep.subr.bf16.mxu0 0
    %1137 = vmatpush1.bf16.msra.mxu0 %v1113
    %1138 = vmatprep.subr.bf16.mxu0 0
    %1139 = vmatpush1.bf16.msra.mxu0 0
    %1140 = vmatprep.subr.bf16.mxu0 0
    %1141 = vmatpush1.bf16.msra.mxu0 0
    %1142 = vmatprep.subr.bf16.mxu0 0
    %1143 = vmatpush1.bf16.msra.mxu0 0
    %1144 = vmatprep.subr.bf16.mxu0 0
    %1145 = vmatpush1.bf16.msra.mxu0 0
    %1146 = vmatprep.subr.bf16.mxu0 0
    %1147 = vmatpush1.bf16.msra.mxu0 0
    %1148 = vmatprep.subr.bf16.mxu0 0
    %1149 = vmatpush1.bf16.msra.mxu0 0
    %1150 = vmatprep.subr.bf16.mxu0 0
    %1151 = vmatpush1.bf16.msra.mxu0 0
    %1152 = vmatprep.subr.bf16.mxu0 0
    %1153 = vmatpush1.bf16.msra.mxu0 0
    %1154 = vmatprep.mubr.bf16.mxu0 0
    %1155 = vmatmul.mubr.bf16.gmra.mrb[0].mxu0 %v1057
    %v1156 = vpop.f32.mrb[0].mxu0
    %v1157 = vadd.f32 0.0, %v1156
    %v1158 = vpop.f32.mrb[0].mxu0
    %v1159 = vpop.f32.mrb[0].mxu0
    %v1160 = vpop.f32.mrb[0].mxu0
    %1161 = vdwg.mxu0
    %v1178 = vunpack.c.l.b16 %v1041
    %v1179 = vunpack.c.l.b16 %v1042
    %v1180 = vunpack.c.l.b16 %v1043
    %v1181 = vunpack.c.l.b16 %v1044
    %v1182 = vunpack.c.l.b16 %v1045
    %v1183 = vunpack.c.l.b16 %v1046
    %v1184 = vunpack.c.l.b16 %v1047
    %v1185 = vunpack.c.l.b16 %v1048
    %v1186 = vunpack.c.l.b16 %v1049
    %v1187 = vunpack.c.l.b16 %v1050
    %v1188 = vunpack.c.l.b16 %v1051
    %v1189 = vunpack.c.l.b16 %v1052
    %v1190 = vunpack.c.l.b16 %v1053
    %v1191 = vunpack.c.l.b16 %v1054
    %v1192 = vunpack.c.l.b16 %v1055
    %v1193 = vunpack.c.l.b16 %v1056
    %v1194 = vpack.c.b16 %v1179, %v1178
    %v1195 = vpack.c.b16 %v1181, %v1180
    %v1196 = vpack.c.b16 %v1183, %v1182
    %v1197 = vpack.c.b16 %v1185, %v1184
    %v1198 = vpack.c.b16 %v1187, %v1186
    %v1199 = vpack.c.b16 %v1189, %v1188
    %v1200 = vpack.c.b16 %v1191, %v1190
    %v1201 = vpack.c.b16 %v1193, %v1192
    %1210 = vmatprep.subr.bf16.mxu0 0
    %1211 = vmatpush1.bf16.msra.mxu0 %v1194
    %1212 = vmatprep.subr.bf16.mxu0 0
    %1213 = vmatpush1.bf16.msra.mxu0 %v1195
    %1214 = vmatprep.subr.bf16.mxu0 0
    %1215 = vmatpush1.bf16.msra.mxu0 %v1196
    %1216 = vmatprep.subr.bf16.mxu0 0
    %1217 = vmatpush1.bf16.msra.mxu0 %v1197
    %1218 = vmatprep.subr.bf16.mxu0 0
    %1219 = vmatpush1.bf16.msra.mxu0 %v1198
    %1220 = vmatprep.subr.bf16.mxu0 0
    %1221 = vmatpush1.bf16.msra.mxu0 %v1199
    %1222 = vmatprep.subr.bf16.mxu0 0
    %1223 = vmatpush1.bf16.msra.mxu0 %v1200
    %1224 = vmatprep.subr.bf16.mxu0 0
    %1225 = vmatpush1.bf16.msra.mxu0 %v1201
    %1226 = vmatprep.subr.bf16.mxu0 0
    %1227 = vmatpush1.bf16.msra.mxu0 0
    %1228 = vmatprep.subr.bf16.mxu0 0
    %1229 = vmatpush1.bf16.msra.mxu0 0
    %1230 = vmatprep.subr.bf16.mxu0 0
    %1231 = vmatpush1.bf16.msra.mxu0 0
    %1232 = vmatprep.subr.bf16.mxu0 0
    %1233 = vmatpush1.bf16.msra.mxu0 0
    %1234 = vmatprep.subr.bf16.mxu0 0
    %1235 = vmatpush1.bf16.msra.mxu0 0
    %1236 = vmatprep.subr.bf16.mxu0 0
    %1237 = vmatpush1.bf16.msra.mxu0 0
    %1238 = vmatprep.subr.bf16.mxu0 0
    %1239 = vmatpush1.bf16.msra.mxu0 0
    %1240 = vmatprep.subr.bf16.mxu0 0
    %1241 = vmatpush1.bf16.msra.mxu0 0
    %1242 = vmatprep.mubr.bf16.mxu0 0
    %1243 = vmatmul.mubr.bf16.gmra.mrb[0].mxu0 %v1040
    %v1244 = vpop.f32.mrb[0].mxu0
    %v1245 = vadd.f32 %v1157, %v1244
    %v1246 = vpop.f32.mrb[0].mxu0
    %v1247 = vpop.f32.mrb[0].mxu0
    %v1248 = vpop.f32.mrb[0].mxu0
    %1249 = vdwg.mxu0
    %v1250 = vpack.c.bf16 %v1009, %v1009
    %v1251 = vld [vmem:[#allocation17 + $0x80] sm:$0xf]
    %v1252 = vld [vmem:[#allocation17 + $0x84] sm:$0xf]
    %v1253 = vld [vmem:[#allocation17 + $0x88] sm:$0xf]
    %v1254 = vld [vmem:[#allocation17 + $0x8c] sm:$0xf]
    %v1255 = vld [vmem:[#allocation17 + $0x90] sm:$0xf]
    %v1256 = vld [vmem:[#allocation17 + $0x94] sm:$0xf]
    %v1257 = vld [vmem:[#allocation17 + $0x98] sm:$0xf]
    %v1258 = vld [vmem:[#allocation17 + $0x9c] sm:$0xf]
    %v1259 = vld [vmem:[#allocation17 + $0xa0] sm:$0xf]
    %v1260 = vld [vmem:[#allocation17 + $0xa4] sm:$0xf]
    %v1261 = vld [vmem:[#allocation17 + $0xa8] sm:$0xf]
    %v1262 = vld [vmem:[#allocation17 + $0xac] sm:$0xf]
    %v1263 = vld [vmem:[#allocation17 + $0xb0] sm:$0xf]
    %v1264 = vld [vmem:[#allocation17 + $0xb4] sm:$0xf]
    %v1265 = vld [vmem:[#allocation17 + $0xb8] sm:$0xf]
    %v1266 = vld [vmem:[#allocation17 + $0xbc] sm:$0xf]
    %v1283 = vunpack.c.l.b16 %v1251
    %v1284 = vunpack.c.l.b16 %v1252
    %v1285 = vunpack.c.l.b16 %v1253
    %v1286 = vunpack.c.l.b16 %v1254
    %v1287 = vunpack.c.l.b16 %v1255
    %v1288 = vunpack.c.l.b16 %v1256
    %v1289 = vunpack.c.l.b16 %v1257
    %v1290 = vunpack.c.l.b16 %v1258
    %v1291 = vunpack.c.l.b16 %v1259
    %v1292 = vunpack.c.l.b16 %v1260
    %v1293 = vunpack.c.l.b16 %v1261
    %v1294 = vunpack.c.l.b16 %v1262
    %v1295 = vunpack.c.l.b16 %v1263
    %v1296 = vunpack.c.l.b16 %v1264
    %v1297 = vunpack.c.l.b16 %v1265
    %v1298 = vunpack.c.l.b16 %v1266
    %v1299 = vpack.c.b16 %v1284, %v1283
    %v1300 = vpack.c.b16 %v1286, %v1285
    %v1301 = vpack.c.b16 %v1288, %v1287
    %v1302 = vpack.c.b16 %v1290, %v1289
    %v1303 = vpack.c.b16 %v1292, %v1291
    %v1304 = vpack.c.b16 %v1294, %v1293
    %v1305 = vpack.c.b16 %v1296, %v1295
    %v1306 = vpack.c.b16 %v1298, %v1297
    %1315 = vmatprep.subr.bf16.mxu0 0
    %1316 = vmatpush1.bf16.msra.mxu0 %v1299
    %1317 = vmatprep.subr.bf16.mxu0 0
    %1318 = vmatpush1.bf16.msra.mxu0 %v1300
    %1319 = vmatprep.subr.bf16.mxu0 0
    %1320 = vmatpush1.bf16.msra.mxu0 %v1301
    %1321 = vmatprep.subr.bf16.mxu0 0
    %1322 = vmatpush1.bf16.msra.mxu0 %v1302
    %1323 = vmatprep.subr.bf16.mxu0 0
    %1324 = vmatpush1.bf16.msra.mxu0 %v1303
    %1325 = vmatprep.subr.bf16.mxu0 0
    %1326 = vmatpush1.bf16.msra.mxu0 %v1304
    %1327 = vmatprep.subr.bf16.mxu0 0
    %1328 = vmatpush1.bf16.msra.mxu0 %v1305
    %1329 = vmatprep.subr.bf16.mxu0 0
    %1330 = vmatpush1.bf16.msra.mxu0 %v1306
    %1331 = vmatprep.subr.bf16.mxu0 0
    %1332 = vmatpush1.bf16.msra.mxu0 0
    %1333 = vmatprep.subr.bf16.mxu0 0
    %1334 = vmatpush1.bf16.msra.mxu0 0
    %1335 = vmatprep.subr.bf16.mxu0 0
    %1336 = vmatpush1.bf16.msra.mxu0 0
    %1337 = vmatprep.subr.bf16.mxu0 0
    %1338 = vmatpush1.bf16.msra.mxu0 0
    %1339 = vmatprep.subr.bf16.mxu0 0
    %1340 = vmatpush1.bf16.msra.mxu0 0
    %1341 = vmatprep.subr.bf16.mxu0 0
    %1342 = vmatpush1.bf16.msra.mxu0 0
    %1343 = vmatprep.subr.bf16.mxu0 0
    %1344 = vmatpush1.bf16.msra.mxu0 0
    %1345 = vmatprep.subr.bf16.mxu0 0
    %1346 = vmatpush1.bf16.msra.mxu0 0
    %1347 = vmatprep.mubr.bf16.mxu0 0
    %1348 = vmatmul.mubr.bf16.gmra.mrb[0].mxu0 %v1250
    %v1349 = vpop.f32.mrb[0].mxu0
    %v1350 = vadd.f32 0.0, %v1349
    %v1351 = vpop.f32.mrb[0].mxu0
    %v1352 = vpop.f32.mrb[0].mxu0
    %v1353 = vpop.f32.mrb[0].mxu0
    %1354 = vdwg.mxu0
    %v1355 = vadd.f32 %v1245, %v1350
    %v1356 = vpack.c.bf16 %v1014, %v1014
    %v1357 = vld [vmem:[#allocation17 + $0xc0] sm:$0xf]
    %v1358 = vld [vmem:[#allocation17 + $0xc4] sm:$0xf]
    %v1359 = vld [vmem:[#allocation17 + $0xc8] sm:$0xf]
    %v1360 = vld [vmem:[#allocation17 + $0xcc] sm:$0xf]
    %v1361 = vld [vmem:[#allocation17 + $0xd0] sm:$0xf]
    %v1362 = vld [vmem:[#allocation17 + $0xd4] sm:$0xf]
    %v1363 = vld [vmem:[#allocation17 + $0xd8] sm:$0xf]
    %v1364 = vld [vmem:[#allocation17 + $0xdc] sm:$0xf]
    %v1365 = vld [vmem:[#allocation17 + $0xe0] sm:$0xf]
    %v1366 = vld [vmem:[#allocation17 + $0xe4] sm:$0xf]
    %v1367 = vld [vmem:[#allocation17 + $0xe8] sm:$0xf]
    %v1368 = vld [vmem:[#allocation17 + $0xec] sm:$0xf]
    %v1369 = vld [vmem:[#allocation17 + $0xf0] sm:$0xf]
    %v1370 = vld [vmem:[#allocation17 + $0xf4] sm:$0xf]
    %v1371 = vld [vmem:[#allocation17 + $0xf8] sm:$0xf]
    %v1372 = vld [vmem:[#allocation17 + $0xfc] sm:$0xf]
    %v1389 = vunpack.c.l.b16 %v1357
    %v1390 = vunpack.c.l.b16 %v1358
    %v1391 = vunpack.c.l.b16 %v1359
    %v1392 = vunpack.c.l.b16 %v1360
    %v1393 = vunpack.c.l.b16 %v1361
    %v1394 = vunpack.c.l.b16 %v1362
    %v1395 = vunpack.c.l.b16 %v1363
    %v1396 = vunpack.c.l.b16 %v1364
    %v1397 = vunpack.c.l.b16 %v1365
    %v1398 = vunpack.c.l.b16 %v1366
    %v1399 = vunpack.c.l.b16 %v1367
    %v1400 = vunpack.c.l.b16 %v1368
    %v1401 = vunpack.c.l.b16 %v1369
    %v1402 = vunpack.c.l.b16 %v1370
    %v1403 = vunpack.c.l.b16 %v1371
    %v1404 = vunpack.c.l.b16 %v1372
    %v1405 = vpack.c.b16 %v1390, %v1389
    %v1406 = vpack.c.b16 %v1392, %v1391
    %v1407 = vpack.c.b16 %v1394, %v1393
    %v1408 = vpack.c.b16 %v1396, %v1395
    %v1409 = vpack.c.b16 %v1398, %v1397
    %v1410 = vpack.c.b16 %v1400, %v1399
    %v1411 = vpack.c.b16 %v1402, %v1401
    %v1412 = vpack.c.b16 %v1404, %v1403
    %1421 = vmatprep.subr.bf16.mxu0 0
    %1422 = vmatpush1.bf16.msra.mxu0 %v1405
    %1423 = vmatprep.subr.bf16.mxu0 0
    %1424 = vmatpush1.bf16.msra.mxu0 %v1406
    %1425 = vmatprep.subr.bf16.mxu0 0
    %1426 = vmatpush1.bf16.msra.mxu0 %v1407
    %1427 = vmatprep.subr.bf16.mxu0 0
    %1428 = vmatpush1.bf16.msra.mxu0 %v1408
    %1429 = vmatprep.subr.bf16.mxu0 0
    %1430 = vmatpush1.bf16.msra.mxu0 %v1409
    %1431 = vmatprep.subr.bf16.mxu0 0
    %1432 = vmatpush1.bf16.msra.mxu0 %v1410
    %1433 = vmatprep.subr.bf16.mxu0 0
    %1434 = vmatpush1.bf16.msra.mxu0 %v1411
    %1435 = vmatprep.subr.bf16.mxu0 0
    %1436 = vmatpush1.bf16.msra.mxu0 %v1412
    %1437 = vmatprep.subr.bf16.mxu0 0
    %1438 = vmatpush1.bf16.msra.mxu0 0
    %1439 = vmatprep.subr.bf16.mxu0 0
    %1440 = vmatpush1.bf16.msra.mxu0 0
    %1441 = vmatprep.subr.bf16.mxu0 0
    %1442 = vmatpush1.bf16.msra.mxu0 0
    %1443 = vmatprep.subr.bf16.mxu0 0
    %1444 = vmatpush1.bf16.msra.mxu0 0
    %1445 = vmatprep.subr.bf16.mxu0 0
    %1446 = vmatpush1.bf16.msra.mxu0 0
    %1447 = vmatprep.subr.bf16.mxu0 0
    %1448 = vmatpush1.bf16.msra.mxu0 0
    %1449 = vmatprep.subr.bf16.mxu0 0
    %1450 = vmatpush1.bf16.msra.mxu0 0
    %1451 = vmatprep.subr.bf16.mxu0 0
    %1452 = vmatpush1.bf16.msra.mxu0 0
    %1453 = vmatprep.mubr.bf16.mxu0 0
    %1454 = vmatmul.mubr.bf16.gmra.mrb[0].mxu0 %v1356
    %v1455 = vpop.f32.mrb[0].mxu0
    %v1456 = vadd.f32 0.0, %v1455
    %v1457 = vpop.f32.mrb[0].mxu0
    %v1458 = vpop.f32.mrb[0].mxu0
    %v1459 = vpop.f32.mrb[0].mxu0
    %1460 = vdwg.mxu0
    %v1461 = vadd.f32 %v1355, %v1456
    %v1462 = vpack.c.bf16 %v1021, %v1021
    %v1463 = vld [vmem:[#allocation17 + $0x100] sm:$0xf]
    %v1464 = vld [vmem:[#allocation17 + $0x104] sm:$0xf]
    %v1465 = vld [vmem:[#allocation17 + $0x108] sm:$0xf]
    %v1466 = vld [vmem:[#allocation17 + $0x10c] sm:$0xf]
    %v1467 = vld [vmem:[#allocation17 + $0x110] sm:$0xf]
    %v1468 = vld [vmem:[#allocation17 + $0x114] sm:$0xf]
    %v1469 = vld [vmem:[#allocation17 + $0x118] sm:$0xf]
    %v1470 = vld [vmem:[#allocation17 + $0x11c] sm:$0xf]
    %v1471 = vld [vmem:[#allocation17 + $0x120] sm:$0xf]
    %v1472 = vld [vmem:[#allocation17 + $0x124] sm:$0xf]
    %v1473 = vld [vmem:[#allocation17 + $0x128] sm:$0xf]
    %v1474 = vld [vmem:[#allocation17 + $0x12c] sm:$0xf]
    %v1475 = vld [vmem:[#allocation17 + $0x130] sm:$0xf]
    %v1476 = vld [vmem:[#allocation17 + $0x134] sm:$0xf]
    %v1477 = vld [vmem:[#allocation17 + $0x138] sm:$0xf]
    %v1478 = vld [vmem:[#allocation17 + $0x13c] sm:$0xf]
    %v1495 = vunpack.c.l.b16 %v1463
    %v1496 = vunpack.c.l.b16 %v1464
    %v1497 = vunpack.c.l.b16 %v1465
    %v1498 = vunpack.c.l.b16 %v1466
    %v1499 = vunpack.c.l.b16 %v1467
    %v1500 = vunpack.c.l.b16 %v1468
    %v1501 = vunpack.c.l.b16 %v1469
    %v1502 = vunpack.c.l.b16 %v1470
    %v1503 = vunpack.c.l.b16 %v1471
    %v1504 = vunpack.c.l.b16 %v1472
    %v1505 = vunpack.c.l.b16 %v1473
    %v1506 = vunpack.c.l.b16 %v1474
    %v1507 = vunpack.c.l.b16 %v1475
    %v1508 = vunpack.c.l.b16 %v1476
    %v1509 = vunpack.c.l.b16 %v1477
    %v1510 = vunpack.c.l.b16 %v1478
    %v1511 = vpack.c.b16 %v1496, %v1495
    %v1512 = vpack.c.b16 %v1498, %v1497
    %v1513 = vpack.c.b16 %v1500, %v1499
    %v1514 = vpack.c.b16 %v1502, %v1501
    %v1515 = vpack.c.b16 %v1504, %v1503
    %v1516 = vpack.c.b16 %v1506, %v1505
    %v1517 = vpack.c.b16 %v1508, %v1507
    %v1518 = vpack.c.b16 %v1510, %v1509
    %1527 = vmatprep.subr.bf16.mxu0 0
    %1528 = vmatpush1.bf16.msra.mxu0 %v1511
    %1529 = vmatprep.subr.bf16.mxu0 0
    %1530 = vmatpush1.bf16.msra.mxu0 %v1512
    %1531 = vmatprep.subr.bf16.mxu0 0
    %1532 = vmatpush1.bf16.msra.mxu0 %v1513
    %1533 = vmatprep.subr.bf16.mxu0 0
    %1534 = vmatpush1.bf16.msra.mxu0 %v1514
    %1535 = vmatprep.subr.bf16.mxu0 0
    %1536 = vmatpush1.bf16.msra.mxu0 %v1515
    %1537 = vmatprep.subr.bf16.mxu0 0
    %1538 = vmatpush1.bf16.msra.mxu0 %v1516
    %1539 = vmatprep.subr.bf16.mxu0 0
    %1540 = vmatpush1.bf16.msra.mxu0 %v1517
    %1541 = vmatprep.subr.bf16.mxu0 0
    %1542 = vmatpush1.bf16.msra.mxu0 %v1518
    %1543 = vmatprep.subr.bf16.mxu0 0
    %1544 = vmatpush1.bf16.msra.mxu0 0
    %1545 = vmatprep.subr.bf16.mxu0 0
    %1546 = vmatpush1.bf16.msra.mxu0 0
    %1547 = vmatprep.subr.bf16.mxu0 0
    %1548 = vmatpush1.bf16.msra.mxu0 0
    %1549 = vmatprep.subr.bf16.mxu0 0
    %1550 = vmatpush1.bf16.msra.mxu0 0
    %1551 = vmatprep.subr.bf16.mxu0 0
    %1552 = vmatpush1.bf16.msra.mxu0 0
    %1553 = vmatprep.subr.bf16.mxu0 0
    %1554 = vmatpush1.bf16.msra.mxu0 0
    %1555 = vmatprep.subr.bf16.mxu0 0
    %1556 = vmatpush1.bf16.msra.mxu0 0
    %1557 = vmatprep.subr.bf16.mxu0 0
    %1558 = vmatpush1.bf16.msra.mxu0 0
    %1559 = vmatprep.mubr.bf16.mxu0 0
    %1560 = vmatmul.mubr.bf16.gmra.mrb[0].mxu0 %v1462
    %v1561 = vpop.f32.mrb[0].mxu0
    %v1562 = vadd.f32 0.0, %v1561
    %v1563 = vpop.f32.mrb[0].mxu0
    %v1564 = vpop.f32.mrb[0].mxu0
    %v1565 = vpop.f32.mrb[0].mxu0
    %1566 = vdwg.mxu0
    %v1567 = vadd.f32 %v1461, %v1562
    %v1568 = vpack.c.bf16 %v1028, %v1028
    %v1569 = vld [vmem:[#allocation17 + $0x140] sm:$0xf]
    %v1570 = vld [vmem:[#allocation17 + $0x144] sm:$0xf]
    %v1571 = vld [vmem:[#allocation17 + $0x148] sm:$0xf]
    %v1572 = vld [vmem:[#allocation17 + $0x14c] sm:$0xf]
    %v1573 = vld [vmem:[#allocation17 + $0x150] sm:$0xf]
    %v1574 = vld [vmem:[#allocation17 + $0x154] sm:$0xf]
    %v1575 = vld [vmem:[#allocation17 + $0x158] sm:$0xf]
    %v1576 = vld [vmem:[#allocation17 + $0x15c] sm:$0xf]
    %v1577 = vld [vmem:[#allocation17 + $0x160] sm:$0xf]
    %v1578 = vld [vmem:[#allocation17 + $0x164] sm:$0xf]
    %v1579 = vld [vmem:[#allocation17 + $0x168] sm:$0xf]
    %v1580 = vld [vmem:[#allocation17 + $0x16c] sm:$0xf]
    %v1581 = vld [vmem:[#allocation17 + $0x170] sm:$0xf]
    %v1582 = vld [vmem:[#allocation17 + $0x174] sm:$0xf]
    %v1583 = vld [vmem:[#allocation17 + $0x178] sm:$0xf]
    %v1584 = vld [vmem:[#allocation17 + $0x17c] sm:$0xf]
    %v1601 = vunpack.c.l.b16 %v1569
    %v1602 = vunpack.c.l.b16 %v1570
    %v1603 = vunpack.c.l.b16 %v1571
    %v1604 = vunpack.c.l.b16 %v1572
    %v1605 = vunpack.c.l.b16 %v1573
    %v1606 = vunpack.c.l.b16 %v1574
    %v1607 = vunpack.c.l.b16 %v1575
    %v1608 = vunpack.c.l.b16 %v1576
    %v1609 = vunpack.c.l.b16 %v1577
    %v1610 = vunpack.c.l.b16 %v1578
    %v1611 = vunpack.c.l.b16 %v1579
    %v1612 = vunpack.c.l.b16 %v1580
    %v1613 = vunpack.c.l.b16 %v1581
    %v1614 = vunpack.c.l.b16 %v1582
    %v1615 = vunpack.c.l.b16 %v1583
    %v1616 = vunpack.c.l.b16 %v1584
    %v1617 = vpack.c.b16 %v1602, %v1601
    %v1618 = vpack.c.b16 %v1604, %v1603
    %v1619 = vpack.c.b16 %v1606, %v1605
    %v1620 = vpack.c.b16 %v1608, %v1607
    %v1621 = vpack.c.b16 %v1610, %v1609
    %v1622 = vpack.c.b16 %v1612, %v1611
    %v1623 = vpack.c.b16 %v1614, %v1613
    %v1624 = vpack.c.b16 %v1616, %v1615
    %1633 = vmatprep.subr.bf16.mxu0 0
    %1634 = vmatpush1.bf16.msra.mxu0 %v1617
    %1635 = vmatprep.subr.bf16.mxu0 0
    %1636 = vmatpush1.bf16.msra.mxu0 %v1618
    %1637 = vmatprep.subr.bf16.mxu0 0
    %1638 = vmatpush1.bf16.msra.mxu0 %v1619
    %1639 = vmatprep.subr.bf16.mxu0 0
    %1640 = vmatpush1.bf16.msra.mxu0 %v1620
    %1641 = vmatprep.subr.bf16.mxu0 0
    %1642 = vmatpush1.bf16.msra.mxu0 %v1621
    %1643 = vmatprep.subr.bf16.mxu0 0
    %1644 = vmatpush1.bf16.msra.mxu0 %v1622
    %1645 = vmatprep.subr.bf16.mxu0 0
    %1646 = vmatpush1.bf16.msra.mxu0 %v1623
    %1647 = vmatprep.subr.bf16.mxu0 0
    %1648 = vmatpush1.bf16.msra.mxu0 %v1624
    %1649 = vmatprep.subr.bf16.mxu0 0
    %1650 = vmatpush1.bf16.msra.mxu0 0
    %1651 = vmatprep.subr.bf16.mxu0 0
    %1652 = vmatpush1.bf16.msra.mxu0 0
    %1653 = vmatprep.subr.bf16.mxu0 0
    %1654 = vmatpush1.bf16.msra.mxu0 0
    %1655 = vmatprep.subr.bf16.mxu0 0
    %1656 = vmatpush1.bf16.msra.mxu0 0
    %1657 = vmatprep.subr.bf16.mxu0 0
    %1658 = vmatpush1.bf16.msra.mxu0 0
    %1659 = vmatprep.subr.bf16.mxu0 0
    %1660 = vmatpush1.bf16.msra.mxu0 0
    %1661 = vmatprep.subr.bf16.mxu0 0
    %1662 = vmatpush1.bf16.msra.mxu0 0
    %1663 = vmatprep.subr.bf16.mxu0 0
    %1664 = vmatpush1.bf16.msra.mxu0 0
    %1665 = vmatprep.mubr.bf16.mxu0 0
    %1666 = vmatmul.mubr.bf16.gmra.mrb[0].mxu0 %v1568
    %v1667 = vpop.f32.mrb[0].mxu0
    %v1668 = vadd.f32 0.0, %v1667
    %v1669 = vpop.f32.mrb[0].mxu0
    %v1670 = vpop.f32.mrb[0].mxu0
    %v1671 = vpop.f32.mrb[0].mxu0
    %1672 = vdwg.mxu0
    %v1673 = vadd.f32 %v1567, %v1668
    %v1674 = vpack.c.bf16 %v1039, %v1039
    %v1675 = vld [vmem:[#allocation17 + $0x180] sm:$0xf]
    %v1676 = vld [vmem:[#allocation17 + $0x184] sm:$0xf]
    %v1677 = vld [vmem:[#allocation17 + $0x188] sm:$0xf]
    %v1678 = vld [vmem:[#allocation17 + $0x18c] sm:$0xf]
    %v1679 = vld [vmem:[#allocation17 + $0x190] sm:$0xf]
    %v1680 = vld [vmem:[#allocation17 + $0x194] sm:$0xf]
    %v1681 = vld [vmem:[#allocation17 + $0x198] sm:$0xf]
    %v1682 = vld [vmem:[#allocation17 + $0x19c] sm:$0xf]
    %v1683 = vld [vmem:[#allocation17 + $0x1a0] sm:$0xf]
    %v1684 = vld [vmem:[#allocation17 + $0x1a4] sm:$0xf]
    %v1685 = vld [vmem:[#allocation17 + $0x1a8] sm:$0xf]
    %v1686 = vld [vmem:[#allocation17 + $0x1ac] sm:$0xf]
    %v1687 = vld [vmem:[#allocation17 + $0x1b0] sm:$0xf]
    %v1688 = vld [vmem:[#allocation17 + $0x1b4] sm:$0xf]
    %v1689 = vld [vmem:[#allocation17 + $0x1b8] sm:$0xf]
    %v1690 = vld [vmem:[#allocation17 + $0x1bc] sm:$0xf]
    %v1707 = vunpack.c.l.b16 %v1675
    %v1708 = vunpack.c.l.b16 %v1676
    %v1709 = vunpack.c.l.b16 %v1677
    %v1710 = vunpack.c.l.b16 %v1678
    %v1711 = vunpack.c.l.b16 %v1679
    %v1712 = vunpack.c.l.b16 %v1680
    %v1713 = vunpack.c.l.b16 %v1681
    %v1714 = vunpack.c.l.b16 %v1682
    %v1715 = vunpack.c.l.b16 %v1683
    %v1716 = vunpack.c.l.b16 %v1684
    %v1717 = vunpack.c.l.b16 %v1685
    %v1718 = vunpack.c.l.b16 %v1686
    %v1719 = vunpack.c.l.b16 %v1687
    %v1720 = vunpack.c.l.b16 %v1688
    %v1721 = vunpack.c.l.b16 %v1689
    %v1722 = vunpack.c.l.b16 %v1690
    %v1723 = vpack.c.b16 %v1708, %v1707
    %v1724 = vpack.c.b16 %v1710, %v1709
    %v1725 = vpack.c.b16 %v1712, %v1711
    %v1726 = vpack.c.b16 %v1714, %v1713
    %v1727 = vpack.c.b16 %v1716, %v1715
    %v1728 = vpack.c.b16 %v1718, %v1717
    %v1729 = vpack.c.b16 %v1720, %v1719
    %v1730 = vpack.c.b16 %v1722, %v1721
    %1739 = vmatprep.subr.bf16.mxu0 0
    %1740 = vmatpush1.bf16.msra.mxu0 %v1723
    %1741 = vmatprep.subr.bf16.mxu0 0
    %1742 = vmatpush1.bf16.msra.mxu0 %v1724
    %1743 = vmatprep.subr.bf16.mxu0 0
    %1744 = vmatpush1.bf16.msra.mxu0 %v1725
    %1745 = vmatprep.subr.bf16.mxu0 0
    %1746 = vmatpush1.bf16.msra.mxu0 %v1726
    %1747 = vmatprep.subr.bf16.mxu0 0
    %1748 = vmatpush1.bf16.msra.mxu0 %v1727
    %1749 = vmatprep.subr.bf16.mxu0 0
    %1750 = vmatpush1.bf16.msra.mxu0 %v1728
    %1751 = vmatprep.subr.bf16.mxu0 0
    %1752 = vmatpush1.bf16.msra.mxu0 %v1729
    %1753 = vmatprep.subr.bf16.mxu0 0
    %1754 = vmatpush1.bf16.msra.mxu0 %v1730
    %1755 = vmatprep.subr.bf16.mxu0 0
    %1756 = vmatpush1.bf16.msra.mxu0 0
    %1757 = vmatprep.subr.bf16.mxu0 0
    %1758 = vmatpush1.bf16.msra.mxu0 0
    %1759 = vmatprep.subr.bf16.mxu0 0
    %1760 = vmatpush1.bf16.msra.mxu0 0
    %1761 = vmatprep.subr.bf16.mxu0 0
    %1762 = vmatpush1.bf16.msra.mxu0 0
    %1763 = vmatprep.subr.bf16.mxu0 0
    %1764 = vmatpush1.bf16.msra.mxu0 0
    %1765 = vmatprep.subr.bf16.mxu0 0
    %1766 = vmatpush1.bf16.msra.mxu0 0
    %1767 = vmatprep.subr.bf16.mxu0 0
    %1768 = vmatpush1.bf16.msra.mxu0 0
    %1769 = vmatprep.subr.bf16.mxu0 0
    %1770 = vmatpush1.bf16.msra.mxu0 0
    %1771 = vmatprep.mubr.bf16.mxu0 0
    %1772 = vmatmul.mubr.bf16.gmra.mrb[0].mxu0 %v1674
    %v1773 = vpop.f32.mrb[0].mxu0
    %v1774 = vadd.f32 0.0, %v1773
    %v1775 = vpop.f32.mrb[0].mxu0
    %v1776 = vpop.f32.mrb[0].mxu0
    %v1777 = vpop.f32.mrb[0].mxu0
    %1778 = vdwg.mxu0
    %v1779 = vadd.f32 %v1673, %v1774
    %v1780 = vld [vmem:[%s12] sm:$0x1]
    %v1782 = vlaneseq
    %v1783 = vshrl.u32 %v1782, 7
    %v1784 = vsub.s32 0, %v1783
    %v1785 = vrot.slane %v1780, %v1784
    %v1787 = vmul.f32 %v1779, %v1785
    %v1788 = vld [vmem:[%s13] sm:$0x1]
    %v1790 = vlaneseq
    %v1791 = vshrl.u32 %v1790, 7
    %v1792 = vsub.s32 0, %v1791
    %v1793 = vrot.slane %v1788, %v1792
    %v1795 = vadd.f32 %v1787, %v1793
    %v1796 = vmax.f32 %v1795, 0.0
    %v1797 = vpack.c.bf16 %v1796, %v1796
    %v1798 = vld [vmem:[#allocation19] sm:$0xf]
    %v1799 = vld [vmem:[#allocation19 + $0x4] sm:$0xf]
    %v1800 = vld [vmem:[#allocation19 + $0x8] sm:$0xf]
    %v1801 = vld [vmem:[#allocation19 + $0xc] sm:$0xf]
    %v1802 = vld [vmem:[#allocation19 + $0x10] sm:$0xf]
    %v1803 = vld [vmem:[#allocation19 + $0x14] sm:$0xf]
    %v1804 = vld [vmem:[#allocation19 + $0x18] sm:$0xf]
    %v1805 = vld [vmem:[#allocation19 + $0x1c] sm:$0xf]
    %v1806 = vld [vmem:[#allocation19 + $0x20] sm:$0xf]
    %v1807 = vld [vmem:[#allocation19 + $0x24] sm:$0xf]
    %v1808 = vld [vmem:[#allocation19 + $0x28] sm:$0xf]
    %v1809 = vld [vmem:[#allocation19 + $0x2c] sm:$0xf]
    %v1810 = vld [vmem:[#allocation19 + $0x30] sm:$0xf]
    %v1811 = vld [vmem:[#allocation19 + $0x34] sm:$0xf]
    %v1812 = vld [vmem:[#allocation19 + $0x38] sm:$0xf]
    %v1813 = vld [vmem:[#allocation19 + $0x3c] sm:$0xf]
    %v1814 = vld [vmem:[%s15] sm:$0x1]
    %v1816 = vlaneseq
    %v1817 = vshrl.u32 %v1816, 7
    %v1818 = vsub.s32 0, %v1817
    %v1819 = vrot.slane %v1814, %v1818
    %v1837 = vunpack.c.l.b16 %v1798
    %v1838 = vunpack.c.l.b16 %v1799
    %v1839 = vunpack.c.l.b16 %v1800
    %v1840 = vunpack.c.l.b16 %v1801
    %v1841 = vunpack.c.l.b16 %v1802
    %v1842 = vunpack.c.l.b16 %v1803
    %v1843 = vunpack.c.l.b16 %v1804
    %v1844 = vunpack.c.l.b16 %v1805
    %v1845 = vunpack.c.l.b16 %v1806
    %v1846 = vunpack.c.l.b16 %v1807
    %v1847 = vunpack.c.l.b16 %v1808
    %v1848 = vunpack.c.l.b16 %v1809
    %v1849 = vunpack.c.l.b16 %v1810
    %v1850 = vunpack.c.l.b16 %v1811
    %v1851 = vunpack.c.l.b16 %v1812
    %v1852 = vunpack.c.l.b16 %v1813
    %v1853 = vpack.c.b16 %v1838, %v1837
    %v1854 = vpack.c.b16 %v1840, %v1839
    %v1855 = vpack.c.b16 %v1842, %v1841
    %v1856 = vpack.c.b16 %v1844, %v1843
    %v1857 = vpack.c.b16 %v1846, %v1845
    %v1858 = vpack.c.b16 %v1848, %v1847
    %v1859 = vpack.c.b16 %v1850, %v1849
    %v1860 = vpack.c.b16 %v1852, %v1851
    %1869 = vmatprep.subr.bf16.mxu0 0
    %1870 = vmatpush1.bf16.msra.mxu0 %v1853
    %1871 = vmatprep.subr.bf16.mxu0 0
    %1872 = vmatpush1.bf16.msra.mxu0 %v1854
    %1873 = vmatprep.subr.bf16.mxu0 0
    %1874 = vmatpush1.bf16.msra.mxu0 %v1855
    %1875 = vmatprep.subr.bf16.mxu0 0
    %1876 = vmatpush1.bf16.msra.mxu0 %v1856
    %1877 = vmatprep.subr.bf16.mxu0 0
    %1878 = vmatpush1.bf16.msra.mxu0 %v1857
    %1879 = vmatprep.subr.bf16.mxu0 0
    %1880 = vmatpush1.bf16.msra.mxu0 %v1858
    %1881 = vmatprep.subr.bf16.mxu0 0
    %1882 = vmatpush1.bf16.msra.mxu0 %v1859
    %1883 = vmatprep.subr.bf16.mxu0 0
    %1884 = vmatpush1.bf16.msra.mxu0 %v1860
    %1885 = vmatprep.subr.bf16.mxu0 0
    %1886 = vmatpush1.bf16.msra.mxu0 0
    %1887 = vmatprep.subr.bf16.mxu0 0
    %1888 = vmatpush1.bf16.msra.mxu0 0
    %1889 = vmatprep.subr.bf16.mxu0 0
    %1890 = vmatpush1.bf16.msra.mxu0 0
    %1891 = vmatprep.subr.bf16.mxu0 0
    %1892 = vmatpush1.bf16.msra.mxu0 0
    %1893 = vmatprep.subr.bf16.mxu0 0
    %1894 = vmatpush1.bf16.msra.mxu0 0
    %1895 = vmatprep.subr.bf16.mxu0 0
    %1896 = vmatpush1.bf16.msra.mxu0 0
    %1897 = vmatprep.subr.bf16.mxu0 0
    %1898 = vmatpush1.bf16.msra.mxu0 0
    %1899 = vmatprep.subr.bf16.mxu0 0
    %1900 = vmatpush1.bf16.msra.mxu0 0
    %1901 = vmatprep.mubr.bf16.mxu0 0
    %1902 = vmatmul.mubr.bf16.gmra.mrb[0].mxu0 %v1797
    %v1903 = vpop.f32.mrb[0].mxu0
    %v1904 = vadd.f32 %v1819, %v1903
    %v1905 = vpop.f32.mrb[0].mxu0
    %v1906 = vpop.f32.mrb[0].mxu0
    %v1907 = vpop.f32.mrb[0].mxu0
    %1908 = vdwg.mxu0
    %1909 = vst [vmem:[#allocation20] sm:$0x3] %v1904
    // Predicated region
    $region102: #{tpu_custom_call.1} parent=1 // pred_check
      _
    $region103: #{tpu_custom_call.1} parent=1 // pred_check_branch
      %1911 = sbr.rel (0) target = $region105
    $region104: #{tpu_custom_call.1} parent=1 // pred_region
      %s1913 = ssub.s32 32, 32
      %1914 = vsyncadd [#allocation7], %s1913
      %s1916 = sshll.u32 [#allocation20], 4
      %s1917 = int_to_ptr.vmem [resolvable:$true] %s1916
      %1919 = dma.vmem_to_hbm [thread:$0]  %s1917, 32, %s16, [#allocation7]
    $region105: #{tpu_custom_call.1} parent=1 // pred_fallthru
      _
    // Predicated region
    $region106: #{tpu_custom_call.1} parent=1 // pred_check
      _
    $region107: #{tpu_custom_call.1} parent=1 // pred_check_branch
      %1921 = sbr.rel (0) target = $region109
    $region108: #{tpu_custom_call.1} parent=1 // pred_region
      %1922 = dma.done [#allocation7], 32
    $region109: #{tpu_custom_call.1} parent=1 // pred_fallthru
      _
    %1923 = vsyncpa [#allocation6], 1
    %1924 = vsyncpa [#allocation9], 1
    %1925 = vsyncpa [#allocation12], 1
    %1926 = vsyncpa [#allocation15], 1
    %1927 = vsyncpa [#allocation18], 1
    %1928 = vsyncpa [#allocation7], 1

</llo_original>
